<compile_context>
chip_gen: v7x
topology: tpu7x:2x2x1
jax: 0.10.0
libtpu: 0.0.40
codegen_flags: <defaults>
</compile_context>

<pallas_src>
import math

import jax
import jax.numpy as jnp
from jax.experimental import pallas as pl
from jax.experimental.pallas import tpu as pltpu


# ----------------------------------------------------------------------------
# helpers
# ----------------------------------------------------------------------------
def _pick_tile(dim: int, target: int, align: int) -> int:
    """Largest align-multiple divisor of `dim` that is <= target, or the full dim."""
    if dim <= target:
        return dim
    t = (target // align) * align
    while t >= align:
        if dim % t == 0:
            return t
        t -= align
    return dim


def _vmem_limit_bytes(default: int = 32 * 1024 * 1024,
                      cap: int = 64 * 1024 * 1024) -> int:
    """Chip-aware scoped-VMEM limit: ~half of physical VMEM, capped.

    v5e/v6e (128 MiB parts) -> 64 MiB; v7x (64 MiB part) -> 32 MiB.
    """
    try:
        cap_bytes = pltpu.get_tpu_info().vmem_capacity_bytes
        return int(min(cap, max(default, cap_bytes // 2)))
    except Exception:
        return default


# ----------------------------------------------------------------------------
# Tiled linear:  y = x @ W_t  with W_t pre-relayouted once to (K, N)
# ----------------------------------------------------------------------------
def _linear_kernel(x_ref, w_ref, o_ref, acc_ref):
    @pl.when(pl.program_id(2) == 0)
    def _init():
        acc_ref[...] = jnp.zeros_like(acc_ref)

    acc_ref[...] += jnp.dot(x_ref[...], w_ref[...],
                            preferred_element_type=jnp.float32)

    @pl.when(pl.program_id(2) == pl.num_programs(2) - 1)
    def _finalize():
        o_ref[...] = acc_ref[...].astype(o_ref.dtype)


def linear(x2d: jax.Array, w_t: jax.Array, *,
           tm_target=512, tn_target=512, tk_target=1024):
    """x2d: (M, K); w_t: (K, N) (pre-transposed once).  Returns (M, N)."""
    M, K = x2d.shape
    K2, N = w_t.shape
    assert K == K2
    tm = _pick_tile(M, tm_target, 8)
    tn = _pick_tile(N, tn_target, 128)
    tk = _pick_tile(K, tk_target, 128)
    grid = (M // tm, N // tn, K // tk)
    return pl.pallas_call(
        _linear_kernel,
        out_shape=jax.ShapeDtypeStruct((M, N), x2d.dtype),
        grid_spec=pltpu.PrefetchScalarGridSpec(
            num_scalar_prefetch=0,
            grid=grid,
            in_specs=[
                pl.BlockSpec((tm, tk), lambda i, j, k: (i, k)),
                pl.BlockSpec((tk, tn), lambda i, j, k: (k, j)),
            ],
            out_specs=pl.BlockSpec((tm, tn), lambda i, j, k: (i, j)),
            scratch_shapes=[pltpu.VMEM((tm, tn), jnp.float32)],
        ),
        compiler_params=pltpu.CompilerParams(
            dimension_semantics=("parallel", "parallel", "arbitrary"),
            vmem_limit_bytes=_vmem_limit_bytes(),
        ),
    )(x2d, w_t)


# ----------------------------------------------------------------------------
# Flash-style causal attention with GQA head batching
# ----------------------------------------------------------------------------
def _make_flash_kernel(scale: float, n_rep: int, tq: int, tkv: int, head_dim: int):
    R = n_rep * tq           # rows per grid point: n_rep query heads x tq queries
    NEG = -1e30              # finite "minus infinity" (no NaN risk)

    def kernel(q_ref, k_ref, v_ref, o_ref, qs_ref, m_ref, l_ref, acc_ref):
        qi = pl.program_id(2)
        ki = pl.program_id(3)
        q_start = qi * tq
        kv_start = ki * tkv

        @pl.when(ki == 0)
        def _init():
            # hoisted q load + reshape + 1/sqrt(D) scale: done once per query tile,
            # reused by every KV step.
            qs_ref[...] = (q_ref[...].reshape(R, head_dim) * scale).astype(qs_ref.dtype)
            m_ref[...] = jnp.full_like(m_ref, NEG)
            l_ref[...] = jnp.zeros_like(l_ref)
            acc_ref[...] = jnp.zeros_like(acc_ref)

        def _scores():
            # (R, D) x (tkv, D)^T -> (R, tkv), f32 accumulation on the MXU
            return jax.lax.dot_general(
                qs_ref[...], k_ref[0, 0],
                dimension_numbers=(((1,), (1,)), ((), ())),
                preferred_element_type=jnp.float32)

        def _accumulate(s):
            m_prev = m_ref[...]
            m_new = jnp.maximum(m_prev, s.max(axis=-1, keepdims=True))
            alpha = jnp.exp(m_prev - m_new)
            p = jnp.exp(s - m_new)
            l_ref[...] = alpha * l_ref[...] + p.sum(axis=-1, keepdims=True)
            acc_ref[...] = alpha * acc_ref[...] + jax.lax.dot_general(
                p.astype(v_ref.dtype), v_ref[0, 0],
                dimension_numbers=(((1,), (0,)), ((), ())),
                preferred_element_type=jnp.float32)
            m_ref[...] = m_new

        # Fast path: KV block entirely below the diagonal -> no mask construction.
        @pl.when(kv_start + tkv <= q_start + 1)
        def _unmasked():
            _accumulate(_scores())

        # Diagonal (partially masked) block: build the causal mask in-kernel.
        @pl.when(jnp.logical_and(kv_start + tkv > q_start + 1,
                                 kv_start <= q_start + tq - 1))
        def _masked():
            s = _scores()
            row = q_start + (jax.lax.broadcasted_iota(jnp.int32, (R, tkv), 0) % tq)
            col = kv_start + jax.lax.broadcasted_iota(jnp.int32, (R, tkv), 1)
            _accumulate(jnp.where(col <= row, s, NEG))

        @pl.when(ki == pl.num_programs(3) - 1)
        def _finalize():
            # exact reciprocal: finalize-only, negligible cost, keeps f32 parity
            out = acc_ref[...] * pl.reciprocal(l_ref[...], approx=False)
            o_ref[...] = out.reshape(1, n_rep, tq, head_dim).astype(o_ref.dtype)

    return kernel


def flash_attention(q, k, v, *, scale: float, n_rep: int,
                    tq_target: int = 128, tkv_target: int = 256):
    """q: (B, Hq, S, D), k/v: (B, Hkv, S, D).  Causal attention, GQA via n_rep."""
    B, Hq, S, D = q.shape
    Hkv = k.shape[1]
    assert Hq == Hkv * n_rep

    tq = _pick_tile(S, tq_target, 8)
    # tkv lane-aligned to 128 and budgeted so R*tkv (f32 s/p temporaries) stays
    # small enough for vregs/VMEM even on v7x's 64 MiB part.
    budget = max(128, (256 * 1024) // max(n_rep * tq, 1))
    tkv_goal = max(128, min(tkv_target, (budget // 128) * 128))
    tkv = _pick_tile(S, tkv_goal, 128)

    R = n_rep * tq
    grid = (B, Hkv, S // tq, S // tkv)
    kernel = _make_flash_kernel(scale, n_rep, tq, tkv, D)

    # K/V block index clamped to the last causally-needed block: skipped blocks
    # re-request the previous index, so Pallas issues no new DMA for them.
    def kv_index_map(b, g, qi, ki):
        last_needed = ((qi + 1) * tq - 1) // tkv
        return (b, g, jnp.minimum(ki, last_needed), 0)

    return pl.pallas_call(
        kernel,
        out_shape=jax.ShapeDtypeStruct((B, Hq, S, D), q.dtype),
        grid_spec=pltpu.PrefetchScalarGridSpec(
            num_scalar_prefetch=0,
            grid=grid,
            in_specs=[
                # n_rep query heads of KV group g, one query tile
                pl.BlockSpec((1, n_rep, tq, D), lambda b, g, qi, ki: (b, g, qi, 0)),
                # one KV head, one (clamped) KV tile; repeat_kv via index_map, no copy
                pl.BlockSpec((1, 1, tkv, D), kv_index_map),
                pl.BlockSpec((1, 1, tkv, D), kv_index_map),
            ],
            out_specs=pl.BlockSpec((1, n_rep, tq, D), lambda b, g, qi, ki: (b, g, qi, 0)),
            scratch_shapes=[
                pltpu.VMEM((R, D), q.dtype),       # scaled q (hoisted out of KV loop)
                pltpu.VMEM((R, 1), jnp.float32),   # running max
                pltpu.VMEM((R, 1), jnp.float32),   # running denom
                pltpu.VMEM((R, D), jnp.float32),   # output accumulator
            ],
        ),
        compiler_params=pltpu.CompilerParams(
            dimension_semantics=("parallel", "parallel", "parallel", "arbitrary"),
            vmem_limit_bytes=_vmem_limit_bytes(),
        ),
    )(q, k, v)


# ----------------------------------------------------------------------------
# Glue (RoPE, reshapes, one-time weight relayout)
# ----------------------------------------------------------------------------
def precompute_freqs(head_dim: int, seqlen: int, theta: float = 10000.0):
    freqs = 1.0 / (theta ** (jnp.arange(0, head_dim, 2, dtype=jnp.float32) / head_dim))
    t = jnp.arange(seqlen, dtype=jnp.float32)
    angles = jnp.outer(t, freqs)                     # (S, D/2)
    return jnp.cos(angles), jnp.sin(angles)


def apply_rope(x, cos, sin):
    # TODO(synk): fuse RoPE into the wq/wk linear epilogue (or the flash kernel via
    # pltpu.roll) to remove this extra HBM elementwise pass; kept as JAX glue for now.
    B, S, H, D = x.shape
    xr = x.reshape(B, S, H, D // 2, 2)
    x_even, x_odd = xr[..., 0], xr[..., 1]
    c = cos[None, :, None, :]
    s = sin[None, :, None, :]
    out_even = x_even * c - x_odd * s
    out_odd = x_even * s + x_odd * c
    return jnp.stack([out_even, out_odd], axis=-1).reshape(B, S, H, D)


def prepare_params(params):
    """One-time weight relayout torch (N, K) -> (K, N), amortized across calls."""
    return {k: jnp.asarray(v).T for k, v in params.items()}


def attention_forward(x, params_t, cos, sin, n_heads, n_kv_heads):
    B, S, dim = x.shape
    D = dim // n_heads
    n_rep = n_heads // n_kv_heads
    scale = 1.0 / math.sqrt(D)

    x2d = x.reshape(B * S, dim)
    xq = linear(x2d, params_t["wq"]).reshape(B, S, n_heads, D)
    xk = linear(x2d, params_t["wk"]).reshape(B, S, n_kv_heads, D)
    xv = linear(x2d, params_t["wv"]).reshape(B, S, n_kv_heads, D)

    xq = apply_rope(xq, cos, sin)
    xk = apply_rope(xk, cos, sin)

    # TODO(synk): read the (B, S, H, D) layout directly from the flash BlockSpecs to
    # drop these transposes; blocked today by the (8,128) tiling rule when n_rep < 8.
    q = jnp.transpose(xq, (0, 2, 1, 3))   # (B, Hq, S, D)
    k = jnp.transpose(xk, (0, 2, 1, 3))   # (B, Hkv, S, D)
    v = jnp.transpose(xv, (0, 2, 1, 3))

    out = flash_attention(q, k, v, scale=scale, n_rep=n_rep)     # (B, Hq, S, D)
    out = jnp.transpose(out, (0, 2, 1, 3)).reshape(B * S, n_heads * D)
    return linear(out, params_t["wo"]).reshape(B, S, dim)


# ----------------------------------------------------------------------------
# Pure-JAX reference for correctness checking (torch (N, K) weight layout)
# ----------------------------------------------------------------------------
def reference_forward(x, params, cos, sin, mask, n_heads, n_kv_heads):
    B, S, dim = x.shape
    D = dim // n_heads
    n_rep = n_heads // n_kv_heads
    xq = (x @ params["wq"].T).reshape(B, S, n_heads, D)
    xk = (x @ params["wk"].T).reshape(B, S, n_kv_heads, D)
    xv = (x @ params["wv"].T).reshape(B, S, n_kv_heads, D)
    xq = apply_rope(xq, cos, sin)
    xk = apply_rope(xk, cos, sin)
    xk = jnp.repeat(xk, n_rep, axis=2)
    xv = jnp.repeat(xv, n_rep, axis=2)
    q = jnp.transpose(xq, (0, 2, 1, 3))
    k = jnp.transpose(xk, (0, 2, 1, 3))
    v = jnp.transpose(xv, (0, 2, 1, 3))
    scores = jnp.einsum("bhqd,bhkd->bhqk", q, k) / math.sqrt(D)
    scores = scores + mask[None, None]
    p = jax.nn.softmax(scores, axis=-1)
    out = jnp.einsum("bhqk,bhkd->bhqd", p, v)
    out = jnp.transpose(out, (0, 2, 1, 3)).reshape(B, S, n_heads * D)
    return out @ params["wo"].T


# ----------------------------------------------------------------------------
# Main
# ----------------------------------------------------------------------------
if __name__ == "__main__":
    # Small but non-degenerate config so the tiled grid, causal block skip,
    # clamped KV index_map, and GQA group indexing are actually exercised:
    # dim=256, n_heads=8, n_kv_heads=4 -> head_dim=32, n_rep=2; S=512 -> 2 KV blocks.
    batch, seqlen, dim = 2, 512, 256
    n_heads, n_kv_heads = 8, 4
    head_dim = dim // n_heads

    key = jax.random.PRNGKey(0)
    kx, kq, kk, kv, ko = jax.random.split(key, 5)

    x = jax.random.normal(kx, (batch, seqlen, dim), dtype=jnp.float32)
    params = {
        "wq": 0.02 * jax.random.normal(kq, (n_heads * head_dim, dim), jnp.float32),
        "wk": 0.02 * jax.random.normal(kk, (n_kv_heads * head_dim, dim), jnp.float32),
        "wv": 0.02 * jax.random.normal(kv, (n_kv_heads * head_dim, dim), jnp.float32),
        "wo": 0.02 * jax.random.normal(ko, (dim, n_heads * head_dim), jnp.float32),
    }
    params_t = prepare_params(params)   # one-time (N,K) -> (K,N) relayout

    cos, sin = precompute_freqs(head_dim, seqlen)

    out = attention_forward(x, params_t, cos, sin, n_heads, n_kv_heads)
    out = jax.block_until_ready(out)

    # reference uses an explicit causal additive mask; the kernel builds it in-kernel
    mask = jnp.triu(jnp.full((seqlen, seqlen), float("-inf"), jnp.float32), k=1)
    ref = reference_forward(x, params, cos, sin, mask, n_heads, n_kv_heads)
    ref = jax.block_until_ready(ref)

    if not jnp.allclose(out, ref, atol=5e-4, rtol=2e-3):
        raise AssertionError("Pallas attention does not match reference")

    print("KERNEL_OK")
</pallas_src>

<mosaic_0001>
module attributes {stable_mosaic.version = 11 : i64} {
  func.func @_linear_kernel(%arg0: i32, %arg1: i32, %arg2: i32, %arg3: memref<512x256xf32, #tpu.memory_space<vmem>>, %arg4: memref<256x256xf32, #tpu.memory_space<vmem>>, %arg5: memref<512x256xf32, #tpu.memory_space<vmem>>, %arg6: memref<512x256xf32, #tpu.memory_space<vmem>>) attributes {dimension_semantics = [#tpu.dimension_semantics<parallel>, #tpu.dimension_semantics<parallel>, #tpu.dimension_semantics<arbitrary>], iteration_bounds = array<i64: 2, 1, 1>, scalar_prefetch = 0 : i64, scratch_operands = 1 : i64, tpu.core_type = #tpu.core_type<tc>, window_params = [{transform_indices = @transform_0, window_bounds = array<i64: 512, 256>}, {transform_indices = @transform_1, window_bounds = array<i64: 256, 256>}, {transform_indices = @transform_2, window_bounds = array<i64: 512, 256>}]} {
    %c0_i32 = arith.constant 0 : i32
    %0 = arith.cmpi eq, %arg2, %c0_i32 : i32
    %1 = arith.extui %0 : i1 to i32
    %c0_i32_0 = arith.constant 0 : i32
    %2 = arith.cmpi ne, %1, %c0_i32_0 : i32
    scf.if %2 {
      %cst_10 = arith.constant 0.000000e+00 : f32
      %12 = vector.broadcast %cst_10 : f32 to vector<512x256xf32>
      %c0_11 = arith.constant 0 : index
      %c0_12 = arith.constant 0 : index
      %13 = vector.load %arg6[%c0_11, %c0_12] : memref<512x256xf32, #tpu.memory_space<vmem>>, vector<512x256xf32>
      tpu.vector_store %arg6[%c0_11, %c0_12], %12 {strides = array<i32>} : memref<512x256xf32, #tpu.memory_space<vmem>>, vector<512x256xf32>,
    } else {
    }
    %c0 = arith.constant 0 : index
    %c0_1 = arith.constant 0 : index
    %3 = vector.load %arg6[%c0, %c0_1] : memref<512x256xf32, #tpu.memory_space<vmem>>, vector<512x256xf32>
    %c0_2 = arith.constant 0 : index
    %c0_3 = arith.constant 0 : index
    %4 = vector.load %arg3[%c0_2, %c0_3] : memref<512x256xf32, #tpu.memory_space<vmem>>, vector<512x256xf32>
    %c0_4 = arith.constant 0 : index
    %c0_5 = arith.constant 0 : index
    %5 = vector.load %arg4[%c0_4, %c0_5] : memref<256x256xf32, #tpu.memory_space<vmem>>, vector<256x256xf32>
    %cst = arith.constant dense<0.000000e+00> : vector<512x256xf32>
    %6 = tpu.matmul %4, %5, %cst {dimension_numbers = #tpu.dot_dimension_numbers<[1], [0], [0], [1], [0, 0, 1, 1], [], []>} : vector<512x256xf32>, vector<256x256xf32>, vector<512x256xf32> -> vector<512x256xf32>
    %7 = arith.addf %3, %6 : vector<512x256xf32>
    %c0_6 = arith.constant 0 : index
    %c0_7 = arith.constant 0 : index
    %8 = vector.load %arg6[%c0_6, %c0_7] : memref<512x256xf32, #tpu.memory_space<vmem>>, vector<512x256xf32>
    tpu.vector_store %arg6[%c0_6, %c0_7], %7 {strides = array<i32>} : memref<512x256xf32, #tpu.memory_space<vmem>>, vector<512x256xf32>,
    %c0_i32_8 = arith.constant 0 : i32
    %9 = arith.cmpi eq, %arg2, %c0_i32_8 : i32
    %10 = arith.extui %9 : i1 to i32
    %c0_i32_9 = arith.constant 0 : i32
    %11 = arith.cmpi ne, %10, %c0_i32_9 : i32
    scf.if %11 {
      %c0_10 = arith.constant 0 : index
      %c0_11 = arith.constant 0 : index
      %12 = vector.load %arg6[%c0_10, %c0_11] : memref<512x256xf32, #tpu.memory_space<vmem>>, vector<512x256xf32>
      %c0_12 = arith.constant 0 : index
      %c0_13 = arith.constant 0 : index
      %13 = vector.load %arg5[%c0_12, %c0_13] : memref<512x256xf32, #tpu.memory_space<vmem>>, vector<512x256xf32>
      tpu.vector_store %arg5[%c0_12, %c0_13], %12 {strides = array<i32>} : memref<512x256xf32, #tpu.memory_space<vmem>>, vector<512x256xf32>,
    } else {
    }
    return
  }
  func.func @transform_0(%arg0: i32, %arg1: i32, %arg2: i32) -> (i32, i32) {
    %c0_i32 = arith.constant 0 : i32
    return %arg0, %arg2 : i32, i32
  }
  func.func @transform_1(%arg0: i32, %arg1: i32, %arg2: i32) -> (i32, i32) {
    %c0_i32 = arith.constant 0 : i32
    return %arg2, %arg1 : i32, i32
  }
  func.func @transform_2(%arg0: i32, %arg1: i32, %arg2: i32) -> (i32, i32) {
    %c0_i32 = arith.constant 0 : i32
    return %arg0, %arg1 : i32, i32
  }
}

</mosaic_0001>

<llo_original>
// kernel: tpu_custom_call.1
$region0: #{tpu_custom_call.1}
  #allocation0 [shape = 'u32[]', space=smem, size = 0x4, offset = 0x4, fixed_abs, tag = 'smem constant byte address 0x4 - core index']
  #allocation1 [shape = 'u32[144,128]{1,0:T(1,128)}', space=vmem, size = 0x12000, scoped, tag = 'internal scratch']
  #allocation2 [shape = 'f32[512,256]{1,0:T(8,128)}', space=vmem, size = 0x80000, scoped, tag = 'scratch operand']
  %s0 = inlined_call_operand.hbm [shape: f32[1024,256], index: 0, kind: input, shape index: {}]
  %s1 = inlined_call_operand.hbm [shape: f32[256,256], index: 1, kind: input, shape index: {}]
  %s2 = inlined_call_operand.hbm [shape: f32[1024,256], index: 2, kind: output, shape index: {}]
  %s3 = sld [smem:[#allocation0]]
  $region57: #{tpu_custom_call.1} parent=0
    _
  %s5 = ssub.s32 1, %s3
  %s6 = scalar_select 0, %s5, %s3
  $region1: #{tpu_custom_call.1} parent=0
    #allocation3 [shape = 'u8[1048576]{0}', space=vmem, size = 0x100000, scoped, tag = 'input window, operand 0']
    #allocation4 [shape = 's32[2]{0}', space=sflag, size = 0x8, scoped, tag = 'scoped memory for tpu_custom_call.1']
    #allocation5 [shape = 's32[2]{0}', space=sflag, size = 0x8, scoped, tag = 'scoped memory for tpu_custom_call.1']
    #allocation6 [shape = 'u8[262144]{0}', space=vmem, size = 0x40000, scoped, tag = 'input window, operand 1, single buffered']
    #allocation7 [shape = 's32[1]{0}', space=sflag, size = 0x4, scoped, tag = 'scoped memory for tpu_custom_call.1']
    #allocation8 [shape = 'u8[1048576]{0}', space=vmem, size = 0x100000, scoped, tag = 'output window, operand 0']
    %7 = vsyncpa [#allocation4], 0
    %s8 = scalar_lea.sflag [#allocation4], 1
    %9 = vsyncpa %s8, 0
    %10 = vsyncpa [#allocation7], 0
    %11 = vsyncpa [#allocation5], 0
    %s12 = scalar_lea.sflag [#allocation5], 1
    %13 = vsyncpa %s12, 0
    loop: start=0, step=1, limit=4
    $region2: #{tpu_custom_call.1} parent=1 // loop_pre_header
      _
    $region3: #{tpu_custom_call.1} parent=1 // loop_header
      %s15 = sphi 0, %s19
      %p16 = scmp.ge.s32.totalorder %s15, 4
      %s22 = sphi 0, %s41
      %s23 = sphi 0, %s37
      %s24 = sphi 0, %s33
      %s25 = sphi 0, %s22
      %s26 = sphi 0, %s23
      %s27 = sphi 0, %s24
      %s28 = sphi 0, %s25
      %s29 = sphi 0, %s26
      %s30 = sphi 0, %s27
      %s46 = sphi 0, %s48
      %s49 = sphi 0, %s46
      %s50 = sphi 0, %s49
      %s66 = sphi 0, %s50
      %s74 = sphi 0, %s76
      %s77 = sphi 0, %s74
      %s78 = sphi 0, %s77
      %s94 = sphi 0, %s78
      %s102 = sphi 0, %s104
      %s105 = sphi 0, %s102
      %s106 = sphi 0, %s105
      %s122 = sphi 0, %s106
    $region4: #{tpu_custom_call.1} parent=1 // loop_header_branch
      %18 = sbr.rel (%p16) target = $region8
    $region5: #{tpu_custom_call.1} parent=1 // loop_body
      %s20 = ssub.s32 %s15, 1
      %s21 = ssub.s32 %s15, 2
      %s31 = sadd.s32 1, %s24
      %p32 = scmp.ge.s32.totalorder %s31, 1
      %s33 = scalar_select %p32, 0, %s31
      %s34 = sadd.s32 1, %s23
      %s35 = scalar_select %p32, %s34, %s23
      %p36 = scmp.ge.s32.totalorder %s35, 1
      %s37 = scalar_select %p36, 0, %s35
      %s38 = sadd.s32 1, %s22
      %s39 = scalar_select %p36, %s38, %s22
      %p40 = scmp.ge.s32.totalorder %s39, 2
      %s41 = scalar_select %p40, 0, %s39
      %s42 = ssub.s32 %s22, %s41
      %s43 = ssub.s32 %s24, %s33
      %s44 = sor.u32 %s42, %s43
      %p45 = scmp.eq.s32.totalorder %s44, 0
      %s47 = sadd.s32 %s46, 1
      %s48 = scalar_select %p45, %s46, %s47
      %p51 = pneg %p45
      %p52 = scmp.eq.s32.totalorder %s15, 1
      %p53 = por %p51, %p52
      %p54 = scmp.ne.s32.totalorder %s46, %s49
      %p55 = scmp.eq.s32.totalorder %s15, 0
      %p56 = por %p54, %p55
      %p57 = scmp.ne.s32.totalorder %s46, %s49
      %p58 = scmp.eq.s32.totalorder %s20, 1
      %p59 = por %p57, %p58
      %p60 = scmp.ne.s32.totalorder %s49, %s50
      %p61 = scmp.eq.s32.totalorder %s20, 0
      %p62 = por %p60, %p61
      %p63 = scmp.ne.s32.totalorder %s49, %s50
      %p64 = scmp.eq.s32.totalorder %s21, 1
      %p65 = por %p63, %p64
      %p67 = scmp.ne.s32.totalorder %s50, %s66
      %p68 = scmp.eq.s32.totalorder %s21, 0
      %p69 = por %p67, %p68
      %s70 = ssub.s32 %s24, %s33
      %s71 = ssub.s32 %s23, %s37
      %s72 = sor.u32 %s70, %s71
      %p73 = scmp.eq.s32.totalorder %s72, 0
      %s75 = sadd.s32 %s74, 1
      %s76 = scalar_select %p73, %s74, %s75
      %p79 = pneg %p73
      %p80 = scmp.eq.s32.totalorder %s15, 1
      %p81 = por %p79, %p80
      %p82 = scmp.ne.s32.totalorder %s74, %s77
      %p83 = scmp.eq.s32.totalorder %s15, 0
      %p84 = por %p82, %p83
      %p85 = scmp.ne.s32.totalorder %s74, %s77
      %p86 = scmp.eq.s32.totalorder %s20, 1
      %p87 = por %p85, %p86
      %p88 = scmp.ne.s32.totalorder %s77, %s78
      %p89 = scmp.eq.s32.totalorder %s20, 0
      %p90 = por %p88, %p89
      %p91 = scmp.ne.s32.totalorder %s77, %s78
      %p92 = scmp.eq.s32.totalorder %s21, 1
      %p93 = por %p91, %p92
      %p95 = scmp.ne.s32.totalorder %s78, %s94
      %p96 = scmp.eq.s32.totalorder %s21, 0
      %p97 = por %p95, %p96
      %s98 = ssub.s32 %s22, %s41
      %s99 = ssub.s32 %s23, %s37
      %s100 = sor.u32 %s98, %s99
      %p101 = scmp.eq.s32.totalorder %s100, 0
      %s103 = sadd.s32 %s102, 1
      %s104 = scalar_select %p101, %s102, %s103
      %p107 = pneg %p101
      %p108 = scmp.eq.s32.totalorder %s15, 1
      %p109 = por %p107, %p108
      %p110 = scmp.ne.s32.totalorder %s102, %s105
      %p111 = scmp.eq.s32.totalorder %s15, 0
      %p112 = por %p110, %p111
      %p113 = scmp.ne.s32.totalorder %s102, %s105
      %p114 = scmp.eq.s32.totalorder %s20, 1
      %p115 = por %p113, %p114
      %p116 = scmp.ne.s32.totalorder %s105, %s106
      %p117 = scmp.eq.s32.totalorder %s20, 0
      %p118 = por %p116, %p117
      %p119 = scmp.ne.s32.totalorder %s105, %s106
      %p120 = scmp.eq.s32.totalorder %s21, 1
      %p121 = por %p119, %p120
      %p123 = scmp.ne.s32.totalorder %s106, %s122
      %p124 = scmp.eq.s32.totalorder %s21, 0
      %p125 = por %p123, %p124
      %p126 = scmp.le.s32.totalorder 1, %s15
      %p127 = scmp.lt.s32.totalorder %s15, 3
      %p128 = pnand %p126, %p127
      %p129 = pneg %p128
      // Predicated region
      $region9: #{tpu_custom_call.1} parent=5 // pred_check
        _
      $region10: #{tpu_custom_call.1} parent=5 // pred_check_branch
        %131 = sbr.rel (%p128) target = $region12
      $region11: #{tpu_custom_call.1} parent=5 // pred_region
        %s132 = ssub.s32 %s15, 1
        // Predicated region
        $region13: #{tpu_custom_call.1} parent=11 // pred_check
          %p133 = pneg %p90
        $region14: #{tpu_custom_call.1} parent=11 // pred_check_branch
          %135 = sbr.rel (%p133) target = $region16
        $region15: #{tpu_custom_call.1} parent=11 // pred_region
          %s136 = smul.u32 32, %s27
          %s137 = smul.u32 2, %s26
          %s139 = ssub.s32 8192, 8192
          %140 = vsyncadd [#allocation7], %s139
          %s141 = smul.addr %s136, 2
          %s142 = sadd.s32 %s137, %s141
          %s143 = smul.addr %s142, 128
          %s144 = scalar_lea.hbm %s1, %s143
          %s145 = sshll.u32 [#allocation6], 4
          %s146 = int_to_ptr.vmem [resolvable:$true] %s145
          %151 = dma.hbm_to_vmem [thread:$0]  %s144, 8192, %s146, [#allocation7], 256, 256, 16
        $region16: #{tpu_custom_call.1} parent=11 // pred_fallthru
          _
      $region12: #{tpu_custom_call.1} parent=5 // pred_fallthru
        _
      %p152 = scmp.lt.s32.totalorder %s15, 2
      // Predicated region
      $region17: #{tpu_custom_call.1} parent=5 // pred_check
        %p153 = pneg %p152
      $region18: #{tpu_custom_call.1} parent=5 // pred_check_branch
        %155 = sbr.rel (%p153) target = $region20
      $region19: #{tpu_custom_call.1} parent=5 // pred_region
        // Predicated region
        $region21: #{tpu_custom_call.1} parent=19 // pred_check
          %p156 = pneg %p56
        $region22: #{tpu_custom_call.1} parent=19 // pred_check_branch
          %158 = sbr.rel (%p156) target = $region24
        $region23: #{tpu_custom_call.1} parent=19 // pred_region
          %s159 = sand.u32 %s46, 1
          %s160 = scalar_lea.sflag [#allocation4], %s159
          %s161 = sand.u32 %s46, 1
          %s162 = smul.addr %s161, 1024
          %s163 = scalar_lea.vmem [#allocation3], %s162
          %s164 = smul.u32 64, %s22
          %s165 = smul.u32 2, %s24
          %s167 = ssub.s32 16384, 16384
          %168 = vsyncadd %s160, %s167
          %s169 = smul.addr %s164, 2
          %s170 = sadd.s32 %s165, %s169
          %s171 = smul.addr %s170, 128
          %s172 = scalar_lea.hbm %s0, %s171
          %s173 = sshll.u32 %s163, 4
          %s174 = int_to_ptr.vmem [resolvable:$true] %s173
          %179 = dma.hbm_to_vmem [thread:$0]  %s172, 16384, %s174, %s160, 256, 256, 16
        $region24: #{tpu_custom_call.1} parent=19 // pred_fallthru
          _
      $region20: #{tpu_custom_call.1} parent=5 // pred_fallthru
        _
      %p180 = scmp.le.s32.totalorder 1, %s15
      %p181 = scmp.lt.s32.totalorder %s15, 3
      %p182 = pnand %p180, %p181
      %p183 = pneg %p182
      // Predicated region
      $region25: #{tpu_custom_call.1} parent=5 // pred_check
        _
      $region26: #{tpu_custom_call.1} parent=5 // pred_check_branch
        %185 = sbr.rel (%p182) target = $region28
      $region27: #{tpu_custom_call.1} parent=5 // pred_region
        %s186 = ssub.s32 %s15, 1
        %s187 = sand.u32 %s49, 1
        %s188 = scalar_lea.sflag [#allocation4], %s187
        %s189 = sand.u32 %s49, 1
        %s190 = smul.addr %s189, 1024
        %s191 = scalar_lea.vmem [#allocation3], %s190
        // Predicated region
        $region29: #{tpu_custom_call.1} parent=27 // pred_check
          %p192 = pneg %p62
        $region30: #{tpu_custom_call.1} parent=27 // pred_check_branch
          %194 = sbr.rel (%p192) target = $region32
        $region31: #{tpu_custom_call.1} parent=27 // pred_region
          %195 = dma.done %s188, 16384
        $region32: #{tpu_custom_call.1} parent=27 // pred_fallthru
          _
        // Predicated region
        $region33: #{tpu_custom_call.1} parent=27 // pred_check
          %p196 = pneg %p90
        $region34: #{tpu_custom_call.1} parent=27 // pred_check_branch
          %198 = sbr.rel (%p196) target = $region36
        $region35: #{tpu_custom_call.1} parent=27 // pred_region
          %199 = dma.done [#allocation7], 8192
        $region36: #{tpu_custom_call.1} parent=27 // pred_fallthru
          _
        %s200 = sand.u32 %s49, 1
        %s201 = scalar_lea.sflag [#allocation4], %s200
        %s202 = sand.u32 %s49, 1
        %s203 = smul.addr %s202, 1024
        %s204 = scalar_lea.vmem [#allocation3], %s203
        %p205 = pneg %p62
        %p206 = pneg %p59
        %p207 = pneg %p90
        %p208 = pneg %p87
        %p209 = pneg %p118
        %p210 = pneg %p115
        %s211 = sand.u32 %s105, 1
        %s212 = scalar_lea.sflag [#allocation5], %s211
        %s213 = sand.u32 %s105, 1
        %s214 = smul.addr %s213, 1024
        %s215 = scalar_lea.vmem [#allocation8], %s214
        %s216 = smul.u32 64, %s25
        %s217 = smul.u32 2, %s27
        %s218 = smul.u32 32, %s27
        %s219 = smul.u32 2, %s26
        %s220 = smul.u32 64, %s25
        %s221 = smul.u32 2, %s26
        %p222 = scmp.eq.s32.totalorder %s27, 0
        // Predicated region
        $region37: #{tpu_custom_call.1} parent=27 // pred_check
          %p223 = pneg %p222
        $region38: #{tpu_custom_call.1} parent=27 // pred_check_branch
          %225 = sbr.rel (%p223) target = $region40
        $region39: #{tpu_custom_call.1} parent=27 // pred_region
          %226 = vst [vmem:[#allocation2] sm:$0xff] 0.0
          %227 = vst [vmem:[#allocation2 + $0x8] sm:$0xff] 0.0
          %228 = vst [vmem:[#allocation2 + $0x10] sm:$0xff] 0.0
          %229 = vst [vmem:[#allocation2 + $0x18] sm:$0xff] 0.0
          %230 = vst [vmem:[#allocation2 + $0x20] sm:$0xff] 0.0
          %231 = vst [vmem:[#allocation2 + $0x28] sm:$0xff] 0.0
          %232 = vst [vmem:[#allocation2 + $0x30] sm:$0xff] 0.0
          %233 = vst [vmem:[#allocation2 + $0x38] sm:$0xff] 0.0
          %234 = vst [vmem:[#allocation2 + $0x40] sm:$0xff] 0.0
          %235 = vst [vmem:[#allocation2 + $0x48] sm:$0xff] 0.0
          %236 = vst [vmem:[#allocation2 + $0x50] sm:$0xff] 0.0
          %237 = vst [vmem:[#allocation2 + $0x58] sm:$0xff] 0.0
          %238 = vst [vmem:[#allocation2 + $0x60] sm:$0xff] 0.0
          %239 = vst [vmem:[#allocation2 + $0x68] sm:$0xff] 0.0
          %240 = vst [vmem:[#allocation2 + $0x70] sm:$0xff] 0.0
          %241 = vst [vmem:[#allocation2 + $0x78] sm:$0xff] 0.0
          %242 = vst [vmem:[#allocation2 + $0x80] sm:$0xff] 0.0
          %243 = vst [vmem:[#allocation2 + $0x88] sm:$0xff] 0.0
          %244 = vst [vmem:[#allocation2 + $0x90] sm:$0xff] 0.0
          %245 = vst [vmem:[#allocation2 + $0x98] sm:$0xff] 0.0
          %246 = vst [vmem:[#allocation2 + $0xa0] sm:$0xff] 0.0
          %247 = vst [vmem:[#allocation2 + $0xa8] sm:$0xff] 0.0
          %248 = vst [vmem:[#allocation2 + $0xb0] sm:$0xff] 0.0
          %249 = vst [vmem:[#allocation2 + $0xb8] sm:$0xff] 0.0
          %250 = vst [vmem:[#allocation2 + $0xc0] sm:$0xff] 0.0
          %251 = vst [vmem:[#allocation2 + $0xc8] sm:$0xff] 0.0
          %252 = vst [vmem:[#allocation2 + $0xd0] sm:$0xff] 0.0
          %253 = vst [vmem:[#allocation2 + $0xd8] sm:$0xff] 0.0
          %254 = vst [vmem:[#allocation2 + $0xe0] sm:$0xff] 0.0
          %255 = vst [vmem:[#allocation2 + $0xe8] sm:$0xff] 0.0
          %256 = vst [vmem:[#allocation2 + $0xf0] sm:$0xff] 0.0
          %257 = vst [vmem:[#allocation2 + $0xf8] sm:$0xff] 0.0
          %258 = vst [vmem:[#allocation2 + $0x100] sm:$0xff] 0.0
          %259 = vst [vmem:[#allocation2 + $0x108] sm:$0xff] 0.0
          %260 = vst [vmem:[#allocation2 + $0x110] sm:$0xff] 0.0
          %261 = vst [vmem:[#allocation2 + $0x118] sm:$0xff] 0.0
          %262 = vst [vmem:[#allocation2 + $0x120] sm:$0xff] 0.0
          %263 = vst [vmem:[#allocation2 + $0x128] sm:$0xff] 0.0
          %264 = vst [vmem:[#allocation2 + $0x130] sm:$0xff] 0.0
          %265 = vst [vmem:[#allocation2 + $0x138] sm:$0xff] 0.0
          %266 = vst [vmem:[#allocation2 + $0x140] sm:$0xff] 0.0
          %267 = vst [vmem:[#allocation2 + $0x148] sm:$0xff] 0.0
          %268 = vst [vmem:[#allocation2 + $0x150] sm:$0xff] 0.0
          %269 = vst [vmem:[#allocation2 + $0x158] sm:$0xff] 0.0
          %270 = vst [vmem:[#allocation2 + $0x160] sm:$0xff] 0.0
          %271 = vst [vmem:[#allocation2 + $0x168] sm:$0xff] 0.0
          %272 = vst [vmem:[#allocation2 + $0x170] sm:$0xff] 0.0
          %273 = vst [vmem:[#allocation2 + $0x178] sm:$0xff] 0.0
          %274 = vst [vmem:[#allocation2 + $0x180] sm:$0xff] 0.0
          %275 = vst [vmem:[#allocation2 + $0x188] sm:$0xff] 0.0
          %276 = vst [vmem:[#allocation2 + $0x190] sm:$0xff] 0.0
          %277 = vst [vmem:[#allocation2 + $0x198] sm:$0xff] 0.0
          %278 = vst [vmem:[#allocation2 + $0x1a0] sm:$0xff] 0.0
          %279 = vst [vmem:[#allocation2 + $0x1a8] sm:$0xff] 0.0
          %280 = vst [vmem:[#allocation2 + $0x1b0] sm:$0xff] 0.0
          %281 = vst [vmem:[#allocation2 + $0x1b8] sm:$0xff] 0.0
          %282 = vst [vmem:[#allocation2 + $0x1c0] sm:$0xff] 0.0
          %283 = vst [vmem:[#allocation2 + $0x1c8] sm:$0xff] 0.0
          %284 = vst [vmem:[#allocation2 + $0x1d0] sm:$0xff] 0.0
          %285 = vst [vmem:[#allocation2 + $0x1d8] sm:$0xff] 0.0
          %286 = vst [vmem:[#allocation2 + $0x1e0] sm:$0xff] 0.0
          %287 = vst [vmem:[#allocation2 + $0x1e8] sm:$0xff] 0.0
          %288 = vst [vmem:[#allocation2 + $0x1f0] sm:$0xff] 0.0
          %289 = vst [vmem:[#allocation2 + $0x1f8] sm:$0xff] 0.0
          %290 = vst [vmem:[#allocation2 + $0x200] sm:$0xff] 0.0
          %291 = vst [vmem:[#allocation2 + $0x208] sm:$0xff] 0.0
          %292 = vst [vmem:[#allocation2 + $0x210] sm:$0xff] 0.0
          %293 = vst [vmem:[#allocation2 + $0x218] sm:$0xff] 0.0
          %294 = vst [vmem:[#allocation2 + $0x220] sm:$0xff] 0.0
          %295 = vst [vmem:[#allocation2 + $0x228] sm:$0xff] 0.0
          %296 = vst [vmem:[#allocation2 + $0x230] sm:$0xff] 0.0
          %297 = vst [vmem:[#allocation2 + $0x238] sm:$0xff] 0.0
          %298 = vst [vmem:[#allocation2 + $0x240] sm:$0xff] 0.0
          %299 = vst [vmem:[#allocation2 + $0x248] sm:$0xff] 0.0
          %300 = vst [vmem:[#allocation2 + $0x250] sm:$0xff] 0.0
          %301 = vst [vmem:[#allocation2 + $0x258] sm:$0xff] 0.0
          %302 = vst [vmem:[#allocation2 + $0x260] sm:$0xff] 0.0
          %303 = vst [vmem:[#allocation2 + $0x268] sm:$0xff] 0.0
          %304 = vst [vmem:[#allocation2 + $0x270] sm:$0xff] 0.0
          %305 = vst [vmem:[#allocation2 + $0x278] sm:$0xff] 0.0
          %306 = vst [vmem:[#allocation2 + $0x280] sm:$0xff] 0.0
          %307 = vst [vmem:[#allocation2 + $0x288] sm:$0xff] 0.0
          %308 = vst [vmem:[#allocation2 + $0x290] sm:$0xff] 0.0
          %309 = vst [vmem:[#allocation2 + $0x298] sm:$0xff] 0.0
          %310 = vst [vmem:[#allocation2 + $0x2a0] sm:$0xff] 0.0
          %311 = vst [vmem:[#allocation2 + $0x2a8] sm:$0xff] 0.0
          %312 = vst [vmem:[#allocation2 + $0x2b0] sm:$0xff] 0.0
          %313 = vst [vmem:[#allocation2 + $0x2b8] sm:$0xff] 0.0
          %314 = vst [vmem:[#allocation2 + $0x2c0] sm:$0xff] 0.0
          %315 = vst [vmem:[#allocation2 + $0x2c8] sm:$0xff] 0.0
          %316 = vst [vmem:[#allocation2 + $0x2d0] sm:$0xff] 0.0
          %317 = vst [vmem:[#allocation2 + $0x2d8] sm:$0xff] 0.0
          %318 = vst [vmem:[#allocation2 + $0x2e0] sm:$0xff] 0.0
          %319 = vst [vmem:[#allocation2 + $0x2e8] sm:$0xff] 0.0
          %320 = vst [vmem:[#allocation2 + $0x2f0] sm:$0xff] 0.0
          %321 = vst [vmem:[#allocation2 + $0x2f8] sm:$0xff] 0.0
          %322 = vst [vmem:[#allocation2 + $0x300] sm:$0xff] 0.0
          %323 = vst [vmem:[#allocation2 + $0x308] sm:$0xff] 0.0
          %324 = vst [vmem:[#allocation2 + $0x310] sm:$0xff] 0.0
          %325 = vst [vmem:[#allocation2 + $0x318] sm:$0xff] 0.0
          %326 = vst [vmem:[#allocation2 + $0x320] sm:$0xff] 0.0
          %327 = vst [vmem:[#allocation2 + $0x328] sm:$0xff] 0.0
          %328 = vst [vmem:[#allocation2 + $0x330] sm:$0xff] 0.0
          %329 = vst [vmem:[#allocation2 + $0x338] sm:$0xff] 0.0
          %330 = vst [vmem:[#allocation2 + $0x340] sm:$0xff] 0.0
          %331 = vst [vmem:[#allocation2 + $0x348] sm:$0xff] 0.0
          %332 = vst [vmem:[#allocation2 + $0x350] sm:$0xff] 0.0
          %333 = vst [vmem:[#allocation2 + $0x358] sm:$0xff] 0.0
          %334 = vst [vmem:[#allocation2 + $0x360] sm:$0xff] 0.0
          %335 = vst [vmem:[#allocation2 + $0x368] sm:$0xff] 0.0
          %336 = vst [vmem:[#allocation2 + $0x370] sm:$0xff] 0.0
          %337 = vst [vmem:[#allocation2 + $0x378] sm:$0xff] 0.0
          %338 = vst [vmem:[#allocation2 + $0x380] sm:$0xff] 0.0
          %339 = vst [vmem:[#allocation2 + $0x388] sm:$0xff] 0.0
          %340 = vst [vmem:[#allocation2 + $0x390] sm:$0xff] 0.0
          %341 = vst [vmem:[#allocation2 + $0x398] sm:$0xff] 0.0
          %342 = vst [vmem:[#allocation2 + $0x3a0] sm:$0xff] 0.0
          %343 = vst [vmem:[#allocation2 + $0x3a8] sm:$0xff] 0.0
          %344 = vst [vmem:[#allocation2 + $0x3b0] sm:$0xff] 0.0
          %345 = vst [vmem:[#allocation2 + $0x3b8] sm:$0xff] 0.0
          %346 = vst [vmem:[#allocation2 + $0x3c0] sm:$0xff] 0.0
          %347 = vst [vmem:[#allocation2 + $0x3c8] sm:$0xff] 0.0
          %348 = vst [vmem:[#allocation2 + $0x3d0] sm:$0xff] 0.0
          %349 = vst [vmem:[#allocation2 + $0x3d8] sm:$0xff] 0.0
          %350 = vst [vmem:[#allocation2 + $0x3e0] sm:$0xff] 0.0
          %351 = vst [vmem:[#allocation2 + $0x3e8] sm:$0xff] 0.0
          %352 = vst [vmem:[#allocation2 + $0x3f0] sm:$0xff] 0.0
          %353 = vst [vmem:[#allocation2 + $0x3f8] sm:$0xff] 0.0
        $region40: #{tpu_custom_call.1} parent=27 // pred_fallthru
          _
        %v354 = vld [vmem:[#allocation2] sm:$0xff]
        %v355 = vld [vmem:[#allocation2 + $0x8] sm:$0xff]
        %v356 = vld [vmem:[#allocation2 + $0x10] sm:$0xff]
        %v357 = vld [vmem:[#allocation2 + $0x18] sm:$0xff]
        %v358 = vld [vmem:[#allocation2 + $0x20] sm:$0xff]
        %v359 = vld [vmem:[#allocation2 + $0x28] sm:$0xff]
        %v360 = vld [vmem:[#allocation2 + $0x30] sm:$0xff]
        %v361 = vld [vmem:[#allocation2 + $0x38] sm:$0xff]
        %v362 = vld [vmem:[#allocation2 + $0x40] sm:$0xff]
        %v363 = vld [vmem:[#allocation2 + $0x48] sm:$0xff]
        %v364 = vld [vmem:[#allocation2 + $0x50] sm:$0xff]
        %v365 = vld [vmem:[#allocation2 + $0x58] sm:$0xff]
        %v366 = vld [vmem:[#allocation2 + $0x60] sm:$0xff]
        %v367 = vld [vmem:[#allocation2 + $0x68] sm:$0xff]
        %v368 = vld [vmem:[#allocation2 + $0x70] sm:$0xff]
        %v369 = vld [vmem:[#allocation2 + $0x78] sm:$0xff]
        %v370 = vld [vmem:[#allocation2 + $0x80] sm:$0xff]
        %v371 = vld [vmem:[#allocation2 + $0x88] sm:$0xff]
        %v372 = vld [vmem:[#allocation2 + $0x90] sm:$0xff]
        %v373 = vld [vmem:[#allocation2 + $0x98] sm:$0xff]
        %v374 = vld [vmem:[#allocation2 + $0xa0] sm:$0xff]
        %v375 = vld [vmem:[#allocation2 + $0xa8] sm:$0xff]
        %v376 = vld [vmem:[#allocation2 + $0xb0] sm:$0xff]
        %v377 = vld [vmem:[#allocation2 + $0xb8] sm:$0xff]
        %v378 = vld [vmem:[#allocation2 + $0xc0] sm:$0xff]
        %v379 = vld [vmem:[#allocation2 + $0xc8] sm:$0xff]
        %v380 = vld [vmem:[#allocation2 + $0xd0] sm:$0xff]
        %v381 = vld [vmem:[#allocation2 + $0xd8] sm:$0xff]
        %v382 = vld [vmem:[#allocation2 + $0xe0] sm:$0xff]
        %v383 = vld [vmem:[#allocation2 + $0xe8] sm:$0xff]
        %v384 = vld [vmem:[#allocation2 + $0xf0] sm:$0xff]
        %v385 = vld [vmem:[#allocation2 + $0xf8] sm:$0xff]
        %v386 = vld [vmem:[#allocation2 + $0x100] sm:$0xff]
        %v387 = vld [vmem:[#allocation2 + $0x108] sm:$0xff]
        %v388 = vld [vmem:[#allocation2 + $0x110] sm:$0xff]
        %v389 = vld [vmem:[#allocation2 + $0x118] sm:$0xff]
        %v390 = vld [vmem:[#allocation2 + $0x120] sm:$0xff]
        %v391 = vld [vmem:[#allocation2 + $0x128] sm:$0xff]
        %v392 = vld [vmem:[#allocation2 + $0x130] sm:$0xff]
        %v393 = vld [vmem:[#allocation2 + $0x138] sm:$0xff]
        %v394 = vld [vmem:[#allocation2 + $0x140] sm:$0xff]
        %v395 = vld [vmem:[#allocation2 + $0x148] sm:$0xff]
        %v396 = vld [vmem:[#allocation2 + $0x150] sm:$0xff]
        %v397 = vld [vmem:[#allocation2 + $0x158] sm:$0xff]
        %v398 = vld [vmem:[#allocation2 + $0x160] sm:$0xff]
        %v399 = vld [vmem:[#allocation2 + $0x168] sm:$0xff]
        %v400 = vld [vmem:[#allocation2 + $0x170] sm:$0xff]
        %v401 = vld [vmem:[#allocation2 + $0x178] sm:$0xff]
        %v402 = vld [vmem:[#allocation2 + $0x180] sm:$0xff]
        %v403 = vld [vmem:[#allocation2 + $0x188] sm:$0xff]
        %v404 = vld [vmem:[#allocation2 + $0x190] sm:$0xff]
        %v405 = vld [vmem:[#allocation2 + $0x198] sm:$0xff]
        %v406 = vld [vmem:[#allocation2 + $0x1a0] sm:$0xff]
        %v407 = vld [vmem:[#allocation2 + $0x1a8] sm:$0xff]
        %v408 = vld [vmem:[#allocation2 + $0x1b0] sm:$0xff]
        %v409 = vld [vmem:[#allocation2 + $0x1b8] sm:$0xff]
        %v410 = vld [vmem:[#allocation2 + $0x1c0] sm:$0xff]
        %v411 = vld [vmem:[#allocation2 + $0x1c8] sm:$0xff]
        %v412 = vld [vmem:[#allocation2 + $0x1d0] sm:$0xff]
        %v413 = vld [vmem:[#allocation2 + $0x1d8] sm:$0xff]
        %v414 = vld [vmem:[#allocation2 + $0x1e0] sm:$0xff]
        %v415 = vld [vmem:[#allocation2 + $0x1e8] sm:$0xff]
        %v416 = vld [vmem:[#allocation2 + $0x1f0] sm:$0xff]
        %v417 = vld [vmem:[#allocation2 + $0x1f8] sm:$0xff]
        %v418 = vld [vmem:[#allocation2 + $0x200] sm:$0xff]
        %v419 = vld [vmem:[#allocation2 + $0x208] sm:$0xff]
        %v420 = vld [vmem:[#allocation2 + $0x210] sm:$0xff]
        %v421 = vld [vmem:[#allocation2 + $0x218] sm:$0xff]
        %v422 = vld [vmem:[#allocation2 + $0x220] sm:$0xff]
        %v423 = vld [vmem:[#allocation2 + $0x228] sm:$0xff]
        %v424 = vld [vmem:[#allocation2 + $0x230] sm:$0xff]
        %v425 = vld [vmem:[#allocation2 + $0x238] sm:$0xff]
        %v426 = vld [vmem:[#allocation2 + $0x240] sm:$0xff]
        %v427 = vld [vmem:[#allocation2 + $0x248] sm:$0xff]
        %v428 = vld [vmem:[#allocation2 + $0x250] sm:$0xff]
        %v429 = vld [vmem:[#allocation2 + $0x258] sm:$0xff]
        %v430 = vld [vmem:[#allocation2 + $0x260] sm:$0xff]
        %v431 = vld [vmem:[#allocation2 + $0x268] sm:$0xff]
        %v432 = vld [vmem:[#allocation2 + $0x270] sm:$0xff]
        %v433 = vld [vmem:[#allocation2 + $0x278] sm:$0xff]
        %v434 = vld [vmem:[#allocation2 + $0x280] sm:$0xff]
        %v435 = vld [vmem:[#allocation2 + $0x288] sm:$0xff]
        %v436 = vld [vmem:[#allocation2 + $0x290] sm:$0xff]
        %v437 = vld [vmem:[#allocation2 + $0x298] sm:$0xff]
        %v438 = vld [vmem:[#allocation2 + $0x2a0] sm:$0xff]
        %v439 = vld [vmem:[#allocation2 + $0x2a8] sm:$0xff]
        %v440 = vld [vmem:[#allocation2 + $0x2b0] sm:$0xff]
        %v441 = vld [vmem:[#allocation2 + $0x2b8] sm:$0xff]
        %v442 = vld [vmem:[#allocation2 + $0x2c0] sm:$0xff]
        %v443 = vld [vmem:[#allocation2 + $0x2c8] sm:$0xff]
        %v444 = vld [vmem:[#allocation2 + $0x2d0] sm:$0xff]
        %v445 = vld [vmem:[#allocation2 + $0x2d8] sm:$0xff]
        %v446 = vld [vmem:[#allocation2 + $0x2e0] sm:$0xff]
        %v447 = vld [vmem:[#allocation2 + $0x2e8] sm:$0xff]
        %v448 = vld [vmem:[#allocation2 + $0x2f0] sm:$0xff]
        %v449 = vld [vmem:[#allocation2 + $0x2f8] sm:$0xff]
        %v450 = vld [vmem:[#allocation2 + $0x300] sm:$0xff]
        %v451 = vld [vmem:[#allocation2 + $0x308] sm:$0xff]
        %v452 = vld [vmem:[#allocation2 + $0x310] sm:$0xff]
        %v453 = vld [vmem:[#allocation2 + $0x318] sm:$0xff]
        %v454 = vld [vmem:[#allocation2 + $0x320] sm:$0xff]
        %v455 = vld [vmem:[#allocation2 + $0x328] sm:$0xff]
        %v456 = vld [vmem:[#allocation2 + $0x330] sm:$0xff]
        %v457 = vld [vmem:[#allocation2 + $0x338] sm:$0xff]
        %v458 = vld [vmem:[#allocation2 + $0x340] sm:$0xff]
        %v459 = vld [vmem:[#allocation2 + $0x348] sm:$0xff]
        %v460 = vld [vmem:[#allocation2 + $0x350] sm:$0xff]
        %v461 = vld [vmem:[#allocation2 + $0x358] sm:$0xff]
        %v462 = vld [vmem:[#allocation2 + $0x360] sm:$0xff]
        %v463 = vld [vmem:[#allocation2 + $0x368] sm:$0xff]
        %v464 = vld [vmem:[#allocation2 + $0x370] sm:$0xff]
        %v465 = vld [vmem:[#allocation2 + $0x378] sm:$0xff]
        %v466 = vld [vmem:[#allocation2 + $0x380] sm:$0xff]
        %v467 = vld [vmem:[#allocation2 + $0x388] sm:$0xff]
        %v468 = vld [vmem:[#allocation2 + $0x390] sm:$0xff]
        %v469 = vld [vmem:[#allocation2 + $0x398] sm:$0xff]
        %v470 = vld [vmem:[#allocation2 + $0x3a0] sm:$0xff]
        %v471 = vld [vmem:[#allocation2 + $0x3a8] sm:$0xff]
        %v472 = vld [vmem:[#allocation2 + $0x3b0] sm:$0xff]
        %v473 = vld [vmem:[#allocation2 + $0x3b8] sm:$0xff]
        %v474 = vld [vmem:[#allocation2 + $0x3c0] sm:$0xff]
        %v475 = vld [vmem:[#allocation2 + $0x3c8] sm:$0xff]
        %v476 = vld [vmem:[#allocation2 + $0x3d0] sm:$0xff]
        %v477 = vld [vmem:[#allocation2 + $0x3d8] sm:$0xff]
        %v478 = vld [vmem:[#allocation2 + $0x3e0] sm:$0xff]
        %v479 = vld [vmem:[#allocation2 + $0x3e8] sm:$0xff]
        %v480 = vld [vmem:[#allocation2 + $0x3f0] sm:$0xff]
        %v481 = vld [vmem:[#allocation2 + $0x3f8] sm:$0xff]
        %v482 = vld [vmem:[%s191] sm:$0xff]
        %v483 = vld [vmem:[%s191 + $0x8] sm:$0xff]
        %v484 = vld [vmem:[%s191 + $0x10] sm:$0xff]
        %v485 = vld [vmem:[%s191 + $0x18] sm:$0xff]
        %v486 = vld [vmem:[%s191 + $0x20] sm:$0xff]
        %v487 = vld [vmem:[%s191 + $0x28] sm:$0xff]
        %v488 = vld [vmem:[%s191 + $0x30] sm:$0xff]
        %v489 = vld [vmem:[%s191 + $0x38] sm:$0xff]
        %v490 = vld [vmem:[%s191 + $0x40] sm:$0xff]
        %v491 = vld [vmem:[%s191 + $0x48] sm:$0xff]
        %v492 = vld [vmem:[%s191 + $0x50] sm:$0xff]
        %v493 = vld [vmem:[%s191 + $0x58] sm:$0xff]
        %v494 = vld [vmem:[%s191 + $0x60] sm:$0xff]
        %v495 = vld [vmem:[%s191 + $0x68] sm:$0xff]
        %v496 = vld [vmem:[%s191 + $0x70] sm:$0xff]
        %v497 = vld [vmem:[%s191 + $0x78] sm:$0xff]
        %v498 = vld [vmem:[%s191 + $0x80] sm:$0xff]
        %v499 = vld [vmem:[%s191 + $0x88] sm:$0xff]
        %v500 = vld [vmem:[%s191 + $0x90] sm:$0xff]
        %v501 = vld [vmem:[%s191 + $0x98] sm:$0xff]
        %v502 = vld [vmem:[%s191 + $0xa0] sm:$0xff]
        %v503 = vld [vmem:[%s191 + $0xa8] sm:$0xff]
        %v504 = vld [vmem:[%s191 + $0xb0] sm:$0xff]
        %v505 = vld [vmem:[%s191 + $0xb8] sm:$0xff]
        %v506 = vld [vmem:[%s191 + $0xc0] sm:$0xff]
        %v507 = vld [vmem:[%s191 + $0xc8] sm:$0xff]
        %v508 = vld [vmem:[%s191 + $0xd0] sm:$0xff]
        %v509 = vld [vmem:[%s191 + $0xd8] sm:$0xff]
        %v510 = vld [vmem:[%s191 + $0xe0] sm:$0xff]
        %v511 = vld [vmem:[%s191 + $0xe8] sm:$0xff]
        %v512 = vld [vmem:[%s191 + $0xf0] sm:$0xff]
        %v513 = vld [vmem:[%s191 + $0xf8] sm:$0xff]
        %v514 = vld [vmem:[%s191 + $0x100] sm:$0xff]
        %v515 = vld [vmem:[%s191 + $0x108] sm:$0xff]
        %v516 = vld [vmem:[%s191 + $0x110] sm:$0xff]
        %v517 = vld [vmem:[%s191 + $0x118] sm:$0xff]
        %v518 = vld [vmem:[%s191 + $0x120] sm:$0xff]
        %v519 = vld [vmem:[%s191 + $0x128] sm:$0xff]
        %v520 = vld [vmem:[%s191 + $0x130] sm:$0xff]
        %v521 = vld [vmem:[%s191 + $0x138] sm:$0xff]
        %v522 = vld [vmem:[%s191 + $0x140] sm:$0xff]
        %v523 = vld [vmem:[%s191 + $0x148] sm:$0xff]
        %v524 = vld [vmem:[%s191 + $0x150] sm:$0xff]
        %v525 = vld [vmem:[%s191 + $0x158] sm:$0xff]
        %v526 = vld [vmem:[%s191 + $0x160] sm:$0xff]
        %v527 = vld [vmem:[%s191 + $0x168] sm:$0xff]
        %v528 = vld [vmem:[%s191 + $0x170] sm:$0xff]
        %v529 = vld [vmem:[%s191 + $0x178] sm:$0xff]
        %v530 = vld [vmem:[%s191 + $0x180] sm:$0xff]
        %v531 = vld [vmem:[%s191 + $0x188] sm:$0xff]
        %v532 = vld [vmem:[%s191 + $0x190] sm:$0xff]
        %v533 = vld [vmem:[%s191 + $0x198] sm:$0xff]
        %v534 = vld [vmem:[%s191 + $0x1a0] sm:$0xff]
        %v535 = vld [vmem:[%s191 + $0x1a8] sm:$0xff]
        %v536 = vld [vmem:[%s191 + $0x1b0] sm:$0xff]
        %v537 = vld [vmem:[%s191 + $0x1b8] sm:$0xff]
        %v538 = vld [vmem:[%s191 + $0x1c0] sm:$0xff]
        %v539 = vld [vmem:[%s191 + $0x1c8] sm:$0xff]
        %v540 = vld [vmem:[%s191 + $0x1d0] sm:$0xff]
        %v541 = vld [vmem:[%s191 + $0x1d8] sm:$0xff]
        %v542 = vld [vmem:[%s191 + $0x1e0] sm:$0xff]
        %v543 = vld [vmem:[%s191 + $0x1e8] sm:$0xff]
        %v544 = vld [vmem:[%s191 + $0x1f0] sm:$0xff]
        %v545 = vld [vmem:[%s191 + $0x1f8] sm:$0xff]
        %v546 = vld [vmem:[%s191 + $0x200] sm:$0xff]
        %v547 = vld [vmem:[%s191 + $0x208] sm:$0xff]
        %v548 = vld [vmem:[%s191 + $0x210] sm:$0xff]
        %v549 = vld [vmem:[%s191 + $0x218] sm:$0xff]
        %v550 = vld [vmem:[%s191 + $0x220] sm:$0xff]
        %v551 = vld [vmem:[%s191 + $0x228] sm:$0xff]
        %v552 = vld [vmem:[%s191 + $0x230] sm:$0xff]
        %v553 = vld [vmem:[%s191 + $0x238] sm:$0xff]
        %v554 = vld [vmem:[%s191 + $0x240] sm:$0xff]
        %v555 = vld [vmem:[%s191 + $0x248] sm:$0xff]
        %v556 = vld [vmem:[%s191 + $0x250] sm:$0xff]
        %v557 = vld [vmem:[%s191 + $0x258] sm:$0xff]
        %v558 = vld [vmem:[%s191 + $0x260] sm:$0xff]
        %v559 = vld [vmem:[%s191 + $0x268] sm:$0xff]
        %v560 = vld [vmem:[%s191 + $0x270] sm:$0xff]
        %v561 = vld [vmem:[%s191 + $0x278] sm:$0xff]
        %v562 = vld [vmem:[%s191 + $0x280] sm:$0xff]
        %v563 = vld [vmem:[%s191 + $0x288] sm:$0xff]
        %v564 = vld [vmem:[%s191 + $0x290] sm:$0xff]
        %v565 = vld [vmem:[%s191 + $0x298] sm:$0xff]
        %v566 = vld [vmem:[%s191 + $0x2a0] sm:$0xff]
        %v567 = vld [vmem:[%s191 + $0x2a8] sm:$0xff]
        %v568 = vld [vmem:[%s191 + $0x2b0] sm:$0xff]
        %v569 = vld [vmem:[%s191 + $0x2b8] sm:$0xff]
        %v570 = vld [vmem:[%s191 + $0x2c0] sm:$0xff]
        %v571 = vld [vmem:[%s191 + $0x2c8] sm:$0xff]
        %v572 = vld [vmem:[%s191 + $0x2d0] sm:$0xff]
        %v573 = vld [vmem:[%s191 + $0x2d8] sm:$0xff]
        %v574 = vld [vmem:[%s191 + $0x2e0] sm:$0xff]
        %v575 = vld [vmem:[%s191 + $0x2e8] sm:$0xff]
        %v576 = vld [vmem:[%s191 + $0x2f0] sm:$0xff]
        %v577 = vld [vmem:[%s191 + $0x2f8] sm:$0xff]
        %v578 = vld [vmem:[%s191 + $0x300] sm:$0xff]
        %v579 = vld [vmem:[%s191 + $0x308] sm:$0xff]
        %v580 = vld [vmem:[%s191 + $0x310] sm:$0xff]
        %v581 = vld [vmem:[%s191 + $0x318] sm:$0xff]
        %v582 = vld [vmem:[%s191 + $0x320] sm:$0xff]
        %v583 = vld [vmem:[%s191 + $0x328] sm:$0xff]
        %v584 = vld [vmem:[%s191 + $0x330] sm:$0xff]
        %v585 = vld [vmem:[%s191 + $0x338] sm:$0xff]
        %v586 = vld [vmem:[%s191 + $0x340] sm:$0xff]
        %v587 = vld [vmem:[%s191 + $0x348] sm:$0xff]
        %v588 = vld [vmem:[%s191 + $0x350] sm:$0xff]
        %v589 = vld [vmem:[%s191 + $0x358] sm:$0xff]
        %v590 = vld [vmem:[%s191 + $0x360] sm:$0xff]
        %v591 = vld [vmem:[%s191 + $0x368] sm:$0xff]
        %v592 = vld [vmem:[%s191 + $0x370] sm:$0xff]
        %v593 = vld [vmem:[%s191 + $0x378] sm:$0xff]
        %v594 = vld [vmem:[%s191 + $0x380] sm:$0xff]
        %v595 = vld [vmem:[%s191 + $0x388] sm:$0xff]
        %v596 = vld [vmem:[%s191 + $0x390] sm:$0xff]
        %v597 = vld [vmem:[%s191 + $0x398] sm:$0xff]
        %v598 = vld [vmem:[%s191 + $0x3a0] sm:$0xff]
        %v599 = vld [vmem:[%s191 + $0x3a8] sm:$0xff]
        %v600 = vld [vmem:[%s191 + $0x3b0] sm:$0xff]
        %v601 = vld [vmem:[%s191 + $0x3b8] sm:$0xff]
        %v602 = vld [vmem:[%s191 + $0x3c0] sm:$0xff]
        %v603 = vld [vmem:[%s191 + $0x3c8] sm:$0xff]
        %v604 = vld [vmem:[%s191 + $0x3d0] sm:$0xff]
        %v605 = vld [vmem:[%s191 + $0x3d8] sm:$0xff]
        %v606 = vld [vmem:[%s191 + $0x3e0] sm:$0xff]
        %v607 = vld [vmem:[%s191 + $0x3e8] sm:$0xff]
        %v608 = vld [vmem:[%s191 + $0x3f0] sm:$0xff]
        %v609 = vld [vmem:[%s191 + $0x3f8] sm:$0xff]
        %v610 = vld [vmem:[#allocation6] sm:$0xff]
        %v611 = vld [vmem:[#allocation6 + $0x8] sm:$0xff]
        %v612 = vld [vmem:[#allocation6 + $0x10] sm:$0xff]
        %v613 = vld [vmem:[#allocation6 + $0x18] sm:$0xff]
        %v614 = vld [vmem:[#allocation6 + $0x20] sm:$0xff]
        %v615 = vld [vmem:[#allocation6 + $0x28] sm:$0xff]
        %v616 = vld [vmem:[#allocation6 + $0x30] sm:$0xff]
        %v617 = vld [vmem:[#allocation6 + $0x38] sm:$0xff]
        %v618 = vld [vmem:[#allocation6 + $0x40] sm:$0xff]
        %v619 = vld [vmem:[#allocation6 + $0x48] sm:$0xff]
        %v620 = vld [vmem:[#allocation6 + $0x50] sm:$0xff]
        %v621 = vld [vmem:[#allocation6 + $0x58] sm:$0xff]
        %v622 = vld [vmem:[#allocation6 + $0x60] sm:$0xff]
        %v623 = vld [vmem:[#allocation6 + $0x68] sm:$0xff]
        %v624 = vld [vmem:[#allocation6 + $0x70] sm:$0xff]
        %v625 = vld [vmem:[#allocation6 + $0x78] sm:$0xff]
        %v626 = vld [vmem:[#allocation6 + $0x80] sm:$0xff]
        %v627 = vld [vmem:[#allocation6 + $0x88] sm:$0xff]
        %v628 = vld [vmem:[#allocation6 + $0x90] sm:$0xff]
        %v629 = vld [vmem:[#allocation6 + $0x98] sm:$0xff]
        %v630 = vld [vmem:[#allocation6 + $0xa0] sm:$0xff]
        %v631 = vld [vmem:[#allocation6 + $0xa8] sm:$0xff]
        %v632 = vld [vmem:[#allocation6 + $0xb0] sm:$0xff]
        %v633 = vld [vmem:[#allocation6 + $0xb8] sm:$0xff]
        %v634 = vld [vmem:[#allocation6 + $0xc0] sm:$0xff]
        %v635 = vld [vmem:[#allocation6 + $0xc8] sm:$0xff]
        %v636 = vld [vmem:[#allocation6 + $0xd0] sm:$0xff]
        %v637 = vld [vmem:[#allocation6 + $0xd8] sm:$0xff]
        %v638 = vld [vmem:[#allocation6 + $0xe0] sm:$0xff]
        %v639 = vld [vmem:[#allocation6 + $0xe8] sm:$0xff]
        %v640 = vld [vmem:[#allocation6 + $0xf0] sm:$0xff]
        %v641 = vld [vmem:[#allocation6 + $0xf8] sm:$0xff]
        %v642 = vld [vmem:[#allocation6 + $0x100] sm:$0xff]
        %v643 = vld [vmem:[#allocation6 + $0x108] sm:$0xff]
        %v644 = vld [vmem:[#allocation6 + $0x110] sm:$0xff]
        %v645 = vld [vmem:[#allocation6 + $0x118] sm:$0xff]
        %v646 = vld [vmem:[#allocation6 + $0x120] sm:$0xff]
        %v647 = vld [vmem:[#allocation6 + $0x128] sm:$0xff]
        %v648 = vld [vmem:[#allocation6 + $0x130] sm:$0xff]
        %v649 = vld [vmem:[#allocation6 + $0x138] sm:$0xff]
        %v650 = vld [vmem:[#allocation6 + $0x140] sm:$0xff]
        %v651 = vld [vmem:[#allocation6 + $0x148] sm:$0xff]
        %v652 = vld [vmem:[#allocation6 + $0x150] sm:$0xff]
        %v653 = vld [vmem:[#allocation6 + $0x158] sm:$0xff]
        %v654 = vld [vmem:[#allocation6 + $0x160] sm:$0xff]
        %v655 = vld [vmem:[#allocation6 + $0x168] sm:$0xff]
        %v656 = vld [vmem:[#allocation6 + $0x170] sm:$0xff]
        %v657 = vld [vmem:[#allocation6 + $0x178] sm:$0xff]
        %v658 = vld [vmem:[#allocation6 + $0x180] sm:$0xff]
        %v659 = vld [vmem:[#allocation6 + $0x188] sm:$0xff]
        %v660 = vld [vmem:[#allocation6 + $0x190] sm:$0xff]
        %v661 = vld [vmem:[#allocation6 + $0x198] sm:$0xff]
        %v662 = vld [vmem:[#allocation6 + $0x1a0] sm:$0xff]
        %v663 = vld [vmem:[#allocation6 + $0x1a8] sm:$0xff]
        %v664 = vld [vmem:[#allocation6 + $0x1b0] sm:$0xff]
        %v665 = vld [vmem:[#allocation6 + $0x1b8] sm:$0xff]
        %v666 = vld [vmem:[#allocation6 + $0x1c0] sm:$0xff]
        %v667 = vld [vmem:[#allocation6 + $0x1c8] sm:$0xff]
        %v668 = vld [vmem:[#allocation6 + $0x1d0] sm:$0xff]
        %v669 = vld [vmem:[#allocation6 + $0x1d8] sm:$0xff]
        %v670 = vld [vmem:[#allocation6 + $0x1e0] sm:$0xff]
        %v671 = vld [vmem:[#allocation6 + $0x1e8] sm:$0xff]
        %v672 = vld [vmem:[#allocation6 + $0x1f0] sm:$0xff]
        %v673 = vld [vmem:[#allocation6 + $0x1f8] sm:$0xff]
        %674 = vmatprep.subr.mxu0 %v611
        %675 = vmatpush1.msra.mxu0 %v610
        %676 = vmatprep.subr.mxu0 %v613
        %677 = vmatpush1.msra.mxu0 %v612
        %678 = vmatprep.subr.mxu0 %v615
        %679 = vmatpush1.msra.mxu0 %v614
        %680 = vmatprep.subr.mxu0 %v617
        %681 = vmatpush1.msra.mxu0 %v616
        %682 = vmatprep.subr.mxu0 %v619
        %683 = vmatpush1.msra.mxu0 %v618
        %684 = vmatprep.subr.mxu0 %v621
        %685 = vmatpush1.msra.mxu0 %v620
        %686 = vmatprep.subr.mxu0 %v623
        %687 = vmatpush1.msra.mxu0 %v622
        %688 = vmatprep.subr.mxu0 %v625
        %689 = vmatpush1.msra.mxu0 %v624
        %690 = vmatprep.subr.mxu0 %v627
        %691 = vmatpush1.msra.mxu0 %v626
        %692 = vmatprep.subr.mxu0 %v629
        %693 = vmatpush1.msra.mxu0 %v628
        %694 = vmatprep.subr.mxu0 %v631
        %695 = vmatpush1.msra.mxu0 %v630
        %696 = vmatprep.subr.mxu0 %v633
        %697 = vmatpush1.msra.mxu0 %v632
        %698 = vmatprep.subr.mxu0 %v635
        %699 = vmatpush1.msra.mxu0 %v634
        %700 = vmatprep.subr.mxu0 %v637
        %701 = vmatpush1.msra.mxu0 %v636
        %702 = vmatprep.subr.mxu0 %v639
        %703 = vmatpush1.msra.mxu0 %v638
        %704 = vmatprep.subr.mxu0 %v641
        %705 = vmatpush1.msra.mxu0 %v640
        %706 = vmatprep.subr.mxu0 %v643
        %707 = vmatpush1.msra.mxu0 %v642
        %708 = vmatprep.subr.mxu0 %v645
        %709 = vmatpush1.msra.mxu0 %v644
        %710 = vmatprep.subr.mxu0 %v647
        %711 = vmatpush1.msra.mxu0 %v646
        %712 = vmatprep.subr.mxu0 %v649
        %713 = vmatpush1.msra.mxu0 %v648
        %714 = vmatprep.subr.mxu0 %v651
        %715 = vmatpush1.msra.mxu0 %v650
        %716 = vmatprep.subr.mxu0 %v653
        %717 = vmatpush1.msra.mxu0 %v652
        %718 = vmatprep.subr.mxu0 %v655
        %719 = vmatpush1.msra.mxu0 %v654
        %720 = vmatprep.subr.mxu0 %v657
        %721 = vmatpush1.msra.mxu0 %v656
        %722 = vmatprep.subr.mxu0 %v659
        %723 = vmatpush1.msra.mxu0 %v658
        %724 = vmatprep.subr.mxu0 %v661
        %725 = vmatpush1.msra.mxu0 %v660
        %726 = vmatprep.subr.mxu0 %v663
        %727 = vmatpush1.msra.mxu0 %v662
        %728 = vmatprep.subr.mxu0 %v665
        %729 = vmatpush1.msra.mxu0 %v664
        %730 = vmatprep.subr.mxu0 %v667
        %731 = vmatpush1.msra.mxu0 %v666
        %732 = vmatprep.subr.mxu0 %v669
        %733 = vmatpush1.msra.mxu0 %v668
        %734 = vmatprep.subr.mxu0 %v671
        %735 = vmatpush1.msra.mxu0 %v670
        %736 = vmatprep.subr.mxu0 %v673
        %737 = vmatpush1.msra.mxu0 %v672
        %738 = vmatprep.mubr.f32.mxu0 %v483
        %739 = vmatmul.mubr.f32.gmra.mrb[0].mxu0 %v482
        %v740 = vpop.f32.mrb[0].mxu0
        %v741 = vadd.f32 0.0, %v740
        %v742 = vpop.f32.mrb[0].mxu0
        %v743 = vadd.f32 0.0, %v742
        %744 = vmatprep.mubr.f32.mxu0 %v485
        %745 = vmatmul.mubr.f32.gmra.mrb[0].mxu0 %v484
        %v746 = vpop.f32.mrb[0].mxu0
        %v747 = vadd.f32 0.0, %v746
        %v748 = vpop.f32.mrb[0].mxu0
        %v749 = vadd.f32 0.0, %v748
        %750 = vmatprep.mubr.f32.mxu0 %v487
        %751 = vmatmul.mubr.f32.gmra.mrb[0].mxu0 %v486
        %v752 = vpop.f32.mrb[0].mxu0
        %v753 = vadd.f32 0.0, %v752
        %v754 = vpop.f32.mrb[0].mxu0
        %v755 = vadd.f32 0.0, %v754
        %756 = vmatprep.mubr.f32.mxu0 %v489
        %757 = vmatmul.mubr.f32.gmra.mrb[0].mxu0 %v488
        %v758 = vpop.f32.mrb[0].mxu0
        %v759 = vadd.f32 0.0, %v758
        %v760 = vpop.f32.mrb[0].mxu0
        %v761 = vadd.f32 0.0, %v760
        %762 = vmatprep.mubr.f32.mxu0 %v491
        %763 = vmatmul.mubr.f32.gmra.mrb[0].mxu0 %v490
        %v764 = vpop.f32.mrb[0].mxu0
        %v765 = vadd.f32 0.0, %v764
        %v766 = vpop.f32.mrb[0].mxu0
        %v767 = vadd.f32 0.0, %v766
        %768 = vmatprep.mubr.f32.mxu0 %v493
        %769 = vmatmul.mubr.f32.gmra.mrb[0].mxu0 %v492
        %v770 = vpop.f32.mrb[0].mxu0
        %v771 = vadd.f32 0.0, %v770
        %v772 = vpop.f32.mrb[0].mxu0
        %v773 = vadd.f32 0.0, %v772
        %774 = vmatprep.mubr.f32.mxu0 %v495
        %775 = vmatmul.mubr.f32.gmra.mrb[0].mxu0 %v494
        %v776 = vpop.f32.mrb[0].mxu0
        %v777 = vadd.f32 0.0, %v776
        %v778 = vpop.f32.mrb[0].mxu0
        %v779 = vadd.f32 0.0, %v778
        %780 = vmatprep.mubr.f32.mxu0 %v497
        %781 = vmatmul.mubr.f32.gmra.mrb[0].mxu0 %v496
        %v782 = vpop.f32.mrb[0].mxu0
        %v783 = vadd.f32 0.0, %v782
        %v784 = vpop.f32.mrb[0].mxu0
        %v785 = vadd.f32 0.0, %v784
        %786 = vmatprep.mubr.f32.mxu0 %v499
        %787 = vmatmul.mubr.f32.gmra.mrb[0].mxu0 %v498
        %v788 = vpop.f32.mrb[0].mxu0
        %v789 = vadd.f32 0.0, %v788
        %v790 = vpop.f32.mrb[0].mxu0
        %v791 = vadd.f32 0.0, %v790
        %792 = vmatprep.mubr.f32.mxu0 %v501
        %793 = vmatmul.mubr.f32.gmra.mrb[0].mxu0 %v500
        %v794 = vpop.f32.mrb[0].mxu0
        %v795 = vadd.f32 0.0, %v794
        %v796 = vpop.f32.mrb[0].mxu0
        %v797 = vadd.f32 0.0, %v796
        %798 = vmatprep.mubr.f32.mxu0 %v503
        %799 = vmatmul.mubr.f32.gmra.mrb[0].mxu0 %v502
        %v800 = vpop.f32.mrb[0].mxu0
        %v801 = vadd.f32 0.0, %v800
        %v802 = vpop.f32.mrb[0].mxu0
        %v803 = vadd.f32 0.0, %v802
        %804 = vmatprep.mubr.f32.mxu0 %v505
        %805 = vmatmul.mubr.f32.gmra.mrb[0].mxu0 %v504
        %v806 = vpop.f32.mrb[0].mxu0
        %v807 = vadd.f32 0.0, %v806
        %v808 = vpop.f32.mrb[0].mxu0
        %v809 = vadd.f32 0.0, %v808
        %810 = vmatprep.mubr.f32.mxu0 %v507
        %811 = vmatmul.mubr.f32.gmra.mrb[0].mxu0 %v506
        %v812 = vpop.f32.mrb[0].mxu0
        %v813 = vadd.f32 0.0, %v812
        %v814 = vpop.f32.mrb[0].mxu0
        %v815 = vadd.f32 0.0, %v814
        %816 = vmatprep.mubr.f32.mxu0 %v509
        %817 = vmatmul.mubr.f32.gmra.mrb[0].mxu0 %v508
        %v818 = vpop.f32.mrb[0].mxu0
        %v819 = vadd.f32 0.0, %v818
        %v820 = vpop.f32.mrb[0].mxu0
        %v821 = vadd.f32 0.0, %v820
        %822 = vmatprep.mubr.f32.mxu0 %v511
        %823 = vmatmul.mubr.f32.gmra.mrb[0].mxu0 %v510
        %v824 = vpop.f32.mrb[0].mxu0
        %v825 = vadd.f32 0.0, %v824
        %v826 = vpop.f32.mrb[0].mxu0
        %v827 = vadd.f32 0.0, %v826
        %828 = vmatprep.mubr.f32.mxu0 %v513
        %829 = vmatmul.mubr.f32.gmra.mrb[0].mxu0 %v512
        %v830 = vpop.f32.mrb[0].mxu0
        %v831 = vadd.f32 0.0, %v830
        %v832 = vpop.f32.mrb[0].mxu0
        %v833 = vadd.f32 0.0, %v832
        %834 = vmatprep.mubr.f32.mxu0 %v515
        %835 = vmatmul.mubr.f32.gmra.mrb[0].mxu0 %v514
        %v836 = vpop.f32.mrb[0].mxu0
        %v837 = vadd.f32 0.0, %v836
        %v838 = vpop.f32.mrb[0].mxu0
        %v839 = vadd.f32 0.0, %v838
        %840 = vmatprep.mubr.f32.mxu0 %v517
        %841 = vmatmul.mubr.f32.gmra.mrb[0].mxu0 %v516
        %v842 = vpop.f32.mrb[0].mxu0
        %v843 = vadd.f32 0.0, %v842
        %v844 = vpop.f32.mrb[0].mxu0
        %v845 = vadd.f32 0.0, %v844
        %846 = vmatprep.mubr.f32.mxu0 %v519
        %847 = vmatmul.mubr.f32.gmra.mrb[0].mxu0 %v518
        %v848 = vpop.f32.mrb[0].mxu0
        %v849 = vadd.f32 0.0, %v848
        %v850 = vpop.f32.mrb[0].mxu0
        %v851 = vadd.f32 0.0, %v850
        %852 = vmatprep.mubr.f32.mxu0 %v521
        %853 = vmatmul.mubr.f32.gmra.mrb[0].mxu0 %v520
        %v854 = vpop.f32.mrb[0].mxu0
        %v855 = vadd.f32 0.0, %v854
        %v856 = vpop.f32.mrb[0].mxu0
        %v857 = vadd.f32 0.0, %v856
        %858 = vmatprep.mubr.f32.mxu0 %v523
        %859 = vmatmul.mubr.f32.gmra.mrb[0].mxu0 %v522
        %v860 = vpop.f32.mrb[0].mxu0
        %v861 = vadd.f32 0.0, %v860
        %v862 = vpop.f32.mrb[0].mxu0
        %v863 = vadd.f32 0.0, %v862
        %864 = vmatprep.mubr.f32.mxu0 %v525
        %865 = vmatmul.mubr.f32.gmra.mrb[0].mxu0 %v524
        %v866 = vpop.f32.mrb[0].mxu0
        %v867 = vadd.f32 0.0, %v866
        %v868 = vpop.f32.mrb[0].mxu0
        %v869 = vadd.f32 0.0, %v868
        %870 = vmatprep.mubr.f32.mxu0 %v527
        %871 = vmatmul.mubr.f32.gmra.mrb[0].mxu0 %v526
        %v872 = vpop.f32.mrb[0].mxu0
        %v873 = vadd.f32 0.0, %v872
        %v874 = vpop.f32.mrb[0].mxu0
        %v875 = vadd.f32 0.0, %v874
        %876 = vmatprep.mubr.f32.mxu0 %v529
        %877 = vmatmul.mubr.f32.gmra.mrb[0].mxu0 %v528
        %v878 = vpop.f32.mrb[0].mxu0
        %v879 = vadd.f32 0.0, %v878
        %v880 = vpop.f32.mrb[0].mxu0
        %v881 = vadd.f32 0.0, %v880
        %882 = vmatprep.mubr.f32.mxu0 %v531
        %883 = vmatmul.mubr.f32.gmra.mrb[0].mxu0 %v530
        %v884 = vpop.f32.mrb[0].mxu0
        %v885 = vadd.f32 0.0, %v884
        %v886 = vpop.f32.mrb[0].mxu0
        %v887 = vadd.f32 0.0, %v886
        %888 = vmatprep.mubr.f32.mxu0 %v533
        %889 = vmatmul.mubr.f32.gmra.mrb[0].mxu0 %v532
        %v890 = vpop.f32.mrb[0].mxu0
        %v891 = vadd.f32 0.0, %v890
        %v892 = vpop.f32.mrb[0].mxu0
        %v893 = vadd.f32 0.0, %v892
        %894 = vmatprep.mubr.f32.mxu0 %v535
        %895 = vmatmul.mubr.f32.gmra.mrb[0].mxu0 %v534
        %v896 = vpop.f32.mrb[0].mxu0
        %v897 = vadd.f32 0.0, %v896
        %v898 = vpop.f32.mrb[0].mxu0
        %v899 = vadd.f32 0.0, %v898
        %900 = vmatprep.mubr.f32.mxu0 %v537
        %901 = vmatmul.mubr.f32.gmra.mrb[0].mxu0 %v536
        %v902 = vpop.f32.mrb[0].mxu0
        %v903 = vadd.f32 0.0, %v902
        %v904 = vpop.f32.mrb[0].mxu0
        %v905 = vadd.f32 0.0, %v904
        %906 = vmatprep.mubr.f32.mxu0 %v539
        %907 = vmatmul.mubr.f32.gmra.mrb[0].mxu0 %v538
        %v908 = vpop.f32.mrb[0].mxu0
        %v909 = vadd.f32 0.0, %v908
        %v910 = vpop.f32.mrb[0].mxu0
        %v911 = vadd.f32 0.0, %v910
        %912 = vmatprep.mubr.f32.mxu0 %v541
        %913 = vmatmul.mubr.f32.gmra.mrb[0].mxu0 %v540
        %v914 = vpop.f32.mrb[0].mxu0
        %v915 = vadd.f32 0.0, %v914
        %v916 = vpop.f32.mrb[0].mxu0
        %v917 = vadd.f32 0.0, %v916
        %918 = vmatprep.mubr.f32.mxu0 %v543
        %919 = vmatmul.mubr.f32.gmra.mrb[0].mxu0 %v542
        %v920 = vpop.f32.mrb[0].mxu0
        %v921 = vadd.f32 0.0, %v920
        %v922 = vpop.f32.mrb[0].mxu0
        %v923 = vadd.f32 0.0, %v922
        %924 = vmatprep.mubr.f32.mxu0 %v545
        %925 = vmatmul.mubr.f32.gmra.mrb[0].mxu0 %v544
        %v926 = vpop.f32.mrb[0].mxu0
        %v927 = vadd.f32 0.0, %v926
        %v928 = vpop.f32.mrb[0].mxu0
        %v929 = vadd.f32 0.0, %v928
        %930 = vmatprep.mubr.f32.mxu0 %v547
        %931 = vmatmul.mubr.f32.gmra.mrb[0].mxu0 %v546
        %v932 = vpop.f32.mrb[0].mxu0
        %v933 = vadd.f32 0.0, %v932
        %v934 = vpop.f32.mrb[0].mxu0
        %v935 = vadd.f32 0.0, %v934
        %936 = vmatprep.mubr.f32.mxu0 %v549
        %937 = vmatmul.mubr.f32.gmra.mrb[0].mxu0 %v548
        %v938 = vpop.f32.mrb[0].mxu0
        %v939 = vadd.f32 0.0, %v938
        %v940 = vpop.f32.mrb[0].mxu0
        %v941 = vadd.f32 0.0, %v940
        %942 = vmatprep.mubr.f32.mxu0 %v551
        %943 = vmatmul.mubr.f32.gmra.mrb[0].mxu0 %v550
        %v944 = vpop.f32.mrb[0].mxu0
        %v945 = vadd.f32 0.0, %v944
        %v946 = vpop.f32.mrb[0].mxu0
        %v947 = vadd.f32 0.0, %v946
        %948 = vmatprep.mubr.f32.mxu0 %v553
        %949 = vmatmul.mubr.f32.gmra.mrb[0].mxu0 %v552
        %v950 = vpop.f32.mrb[0].mxu0
        %v951 = vadd.f32 0.0, %v950
        %v952 = vpop.f32.mrb[0].mxu0
        %v953 = vadd.f32 0.0, %v952
        %954 = vmatprep.mubr.f32.mxu0 %v555
        %955 = vmatmul.mubr.f32.gmra.mrb[0].mxu0 %v554
        %v956 = vpop.f32.mrb[0].mxu0
        %v957 = vadd.f32 0.0, %v956
        %v958 = vpop.f32.mrb[0].mxu0
        %v959 = vadd.f32 0.0, %v958
        %960 = vmatprep.mubr.f32.mxu0 %v557
        %961 = vmatmul.mubr.f32.gmra.mrb[0].mxu0 %v556
        %v962 = vpop.f32.mrb[0].mxu0
        %v963 = vadd.f32 0.0, %v962
        %v964 = vpop.f32.mrb[0].mxu0
        %v965 = vadd.f32 0.0, %v964
        %966 = vmatprep.mubr.f32.mxu0 %v559
        %967 = vmatmul.mubr.f32.gmra.mrb[0].mxu0 %v558
        %v968 = vpop.f32.mrb[0].mxu0
        %v969 = vadd.f32 0.0, %v968
        %v970 = vpop.f32.mrb[0].mxu0
        %v971 = vadd.f32 0.0, %v970
        %972 = vmatprep.mubr.f32.mxu0 %v561
        %973 = vmatmul.mubr.f32.gmra.mrb[0].mxu0 %v560
        %v974 = vpop.f32.mrb[0].mxu0
        %v975 = vadd.f32 0.0, %v974
        %v976 = vpop.f32.mrb[0].mxu0
        %v977 = vadd.f32 0.0, %v976
        %978 = vmatprep.mubr.f32.mxu0 %v563
        %979 = vmatmul.mubr.f32.gmra.mrb[0].mxu0 %v562
        %v980 = vpop.f32.mrb[0].mxu0
        %v981 = vadd.f32 0.0, %v980
        %v982 = vpop.f32.mrb[0].mxu0
        %v983 = vadd.f32 0.0, %v982
        %984 = vmatprep.mubr.f32.mxu0 %v565
        %985 = vmatmul.mubr.f32.gmra.mrb[0].mxu0 %v564
        %v986 = vpop.f32.mrb[0].mxu0
        %v987 = vadd.f32 0.0, %v986
        %v988 = vpop.f32.mrb[0].mxu0
        %v989 = vadd.f32 0.0, %v988
        %990 = vmatprep.mubr.f32.mxu0 %v567
        %991 = vmatmul.mubr.f32.gmra.mrb[0].mxu0 %v566
        %v992 = vpop.f32.mrb[0].mxu0
        %v993 = vadd.f32 0.0, %v992
        %v994 = vpop.f32.mrb[0].mxu0
        %v995 = vadd.f32 0.0, %v994
        %996 = vmatprep.mubr.f32.mxu0 %v569
        %997 = vmatmul.mubr.f32.gmra.mrb[0].mxu0 %v568
        %v998 = vpop.f32.mrb[0].mxu0
        %v999 = vadd.f32 0.0, %v998
        %v1000 = vpop.f32.mrb[0].mxu0
        %v1001 = vadd.f32 0.0, %v1000
        %1002 = vmatprep.mubr.f32.mxu0 %v571
        %1003 = vmatmul.mubr.f32.gmra.mrb[0].mxu0 %v570
        %v1004 = vpop.f32.mrb[0].mxu0
        %v1005 = vadd.f32 0.0, %v1004
        %v1006 = vpop.f32.mrb[0].mxu0
        %v1007 = vadd.f32 0.0, %v1006
        %1008 = vmatprep.mubr.f32.mxu0 %v573
        %1009 = vmatmul.mubr.f32.gmra.mrb[0].mxu0 %v572
        %v1010 = vpop.f32.mrb[0].mxu0
        %v1011 = vadd.f32 0.0, %v1010
        %v1012 = vpop.f32.mrb[0].mxu0
        %v1013 = vadd.f32 0.0, %v1012
        %1014 = vmatprep.mubr.f32.mxu0 %v575
        %1015 = vmatmul.mubr.f32.gmra.mrb[0].mxu0 %v574
        %v1016 = vpop.f32.mrb[0].mxu0
        %v1017 = vadd.f32 0.0, %v1016
        %v1018 = vpop.f32.mrb[0].mxu0
        %v1019 = vadd.f32 0.0, %v1018
        %1020 = vmatprep.mubr.f32.mxu0 %v577
        %1021 = vmatmul.mubr.f32.gmra.mrb[0].mxu0 %v576
        %v1022 = vpop.f32.mrb[0].mxu0
        %v1023 = vadd.f32 0.0, %v1022
        %v1024 = vpop.f32.mrb[0].mxu0
        %v1025 = vadd.f32 0.0, %v1024
        %1026 = vmatprep.mubr.f32.mxu0 %v579
        %1027 = vmatmul.mubr.f32.gmra.mrb[0].mxu0 %v578
        %v1028 = vpop.f32.mrb[0].mxu0
        %v1029 = vadd.f32 0.0, %v1028
        %v1030 = vpop.f32.mrb[0].mxu0
        %v1031 = vadd.f32 0.0, %v1030
        %1032 = vmatprep.mubr.f32.mxu0 %v581
        %1033 = vmatmul.mubr.f32.gmra.mrb[0].mxu0 %v580
        %v1034 = vpop.f32.mrb[0].mxu0
        %v1035 = vadd.f32 0.0, %v1034
        %v1036 = vpop.f32.mrb[0].mxu0
        %v1037 = vadd.f32 0.0, %v1036
        %1038 = vmatprep.mubr.f32.mxu0 %v583
        %1039 = vmatmul.mubr.f32.gmra.mrb[0].mxu0 %v582
        %v1040 = vpop.f32.mrb[0].mxu0
        %v1041 = vadd.f32 0.0, %v1040
        %v1042 = vpop.f32.mrb[0].mxu0
        %v1043 = vadd.f32 0.0, %v1042
        %1044 = vmatprep.mubr.f32.mxu0 %v585
        %1045 = vmatmul.mubr.f32.gmra.mrb[0].mxu0 %v584
        %v1046 = vpop.f32.mrb[0].mxu0
        %v1047 = vadd.f32 0.0, %v1046
        %v1048 = vpop.f32.mrb[0].mxu0
        %v1049 = vadd.f32 0.0, %v1048
        %1050 = vmatprep.mubr.f32.mxu0 %v587
        %1051 = vmatmul.mubr.f32.gmra.mrb[0].mxu0 %v586
        %v1052 = vpop.f32.mrb[0].mxu0
        %v1053 = vadd.f32 0.0, %v1052
        %v1054 = vpop.f32.mrb[0].mxu0
        %v1055 = vadd.f32 0.0, %v1054
        %1056 = vmatprep.mubr.f32.mxu0 %v589
        %1057 = vmatmul.mubr.f32.gmra.mrb[0].mxu0 %v588
        %v1058 = vpop.f32.mrb[0].mxu0
        %v1059 = vadd.f32 0.0, %v1058
        %v1060 = vpop.f32.mrb[0].mxu0
        %v1061 = vadd.f32 0.0, %v1060
        %1062 = vmatprep.mubr.f32.mxu0 %v591
        %1063 = vmatmul.mubr.f32.gmra.mrb[0].mxu0 %v590
        %v1064 = vpop.f32.mrb[0].mxu0
        %v1065 = vadd.f32 0.0, %v1064
        %v1066 = vpop.f32.mrb[0].mxu0
        %v1067 = vadd.f32 0.0, %v1066
        %1068 = vmatprep.mubr.f32.mxu0 %v593
        %1069 = vmatmul.mubr.f32.gmra.mrb[0].mxu0 %v592
        %v1070 = vpop.f32.mrb[0].mxu0
        %v1071 = vadd.f32 0.0, %v1070
        %v1072 = vpop.f32.mrb[0].mxu0
        %v1073 = vadd.f32 0.0, %v1072
        %1074 = vmatprep.mubr.f32.mxu0 %v595
        %1075 = vmatmul.mubr.f32.gmra.mrb[0].mxu0 %v594
        %v1076 = vpop.f32.mrb[0].mxu0
        %v1077 = vadd.f32 0.0, %v1076
        %v1078 = vpop.f32.mrb[0].mxu0
        %v1079 = vadd.f32 0.0, %v1078
        %1080 = vmatprep.mubr.f32.mxu0 %v597
        %1081 = vmatmul.mubr.f32.gmra.mrb[0].mxu0 %v596
        %v1082 = vpop.f32.mrb[0].mxu0
        %v1083 = vadd.f32 0.0, %v1082
        %v1084 = vpop.f32.mrb[0].mxu0
        %v1085 = vadd.f32 0.0, %v1084
        %1086 = vmatprep.mubr.f32.mxu0 %v599
        %1087 = vmatmul.mubr.f32.gmra.mrb[0].mxu0 %v598
        %v1088 = vpop.f32.mrb[0].mxu0
        %v1089 = vadd.f32 0.0, %v1088
        %v1090 = vpop.f32.mrb[0].mxu0
        %v1091 = vadd.f32 0.0, %v1090
        %1092 = vmatprep.mubr.f32.mxu0 %v601
        %1093 = vmatmul.mubr.f32.gmra.mrb[0].mxu0 %v600
        %v1094 = vpop.f32.mrb[0].mxu0
        %v1095 = vadd.f32 0.0, %v1094
        %v1096 = vpop.f32.mrb[0].mxu0
        %v1097 = vadd.f32 0.0, %v1096
        %1098 = vmatprep.mubr.f32.mxu0 %v603
        %1099 = vmatmul.mubr.f32.gmra.mrb[0].mxu0 %v602
        %v1100 = vpop.f32.mrb[0].mxu0
        %v1101 = vadd.f32 0.0, %v1100
        %v1102 = vpop.f32.mrb[0].mxu0
        %v1103 = vadd.f32 0.0, %v1102
        %1104 = vmatprep.mubr.f32.mxu0 %v605
        %1105 = vmatmul.mubr.f32.gmra.mrb[0].mxu0 %v604
        %v1106 = vpop.f32.mrb[0].mxu0
        %v1107 = vadd.f32 0.0, %v1106
        %v1108 = vpop.f32.mrb[0].mxu0
        %v1109 = vadd.f32 0.0, %v1108
        %1110 = vmatprep.mubr.f32.mxu0 %v607
        %1111 = vmatmul.mubr.f32.gmra.mrb[0].mxu0 %v606
        %v1112 = vpop.f32.mrb[0].mxu0
        %v1113 = vadd.f32 0.0, %v1112
        %v1114 = vpop.f32.mrb[0].mxu0
        %v1115 = vadd.f32 0.0, %v1114
        %1116 = vmatprep.mubr.f32.mxu0 %v609
        %1117 = vmatmul.mubr.f32.gmra.mrb[0].mxu0 %v608
        %v1118 = vpop.f32.mrb[0].mxu0
        %v1119 = vadd.f32 0.0, %v1118
        %v1120 = vpop.f32.mrb[0].mxu0
        %v1121 = vadd.f32 0.0, %v1120
        %1122 = vdwg.mxu0
        %v1123 = vadd.f32 %v354, %v741
        %v1124 = vadd.f32 %v355, %v743
        %v1125 = vadd.f32 %v356, %v747
        %v1126 = vadd.f32 %v357, %v749
        %v1127 = vadd.f32 %v358, %v753
        %v1128 = vadd.f32 %v359, %v755
        %v1129 = vadd.f32 %v360, %v759
        %v1130 = vadd.f32 %v361, %v761
        %v1131 = vadd.f32 %v362, %v765
        %v1132 = vadd.f32 %v363, %v767
        %v1133 = vadd.f32 %v364, %v771
        %v1134 = vadd.f32 %v365, %v773
        %v1135 = vadd.f32 %v366, %v777
        %v1136 = vadd.f32 %v367, %v779
        %v1137 = vadd.f32 %v368, %v783
        %v1138 = vadd.f32 %v369, %v785
        %v1139 = vadd.f32 %v370, %v789
        %v1140 = vadd.f32 %v371, %v791
        %v1141 = vadd.f32 %v372, %v795
        %v1142 = vadd.f32 %v373, %v797
        %v1143 = vadd.f32 %v374, %v801
        %v1144 = vadd.f32 %v375, %v803
        %v1145 = vadd.f32 %v376, %v807
        %v1146 = vadd.f32 %v377, %v809
        %v1147 = vadd.f32 %v378, %v813
        %v1148 = vadd.f32 %v379, %v815
        %v1149 = vadd.f32 %v380, %v819
        %v1150 = vadd.f32 %v381, %v821
        %v1151 = vadd.f32 %v382, %v825
        %v1152 = vadd.f32 %v383, %v827
        %v1153 = vadd.f32 %v384, %v831
        %v1154 = vadd.f32 %v385, %v833
        %v1155 = vadd.f32 %v386, %v837
        %v1156 = vadd.f32 %v387, %v839
        %v1157 = vadd.f32 %v388, %v843
        %v1158 = vadd.f32 %v389, %v845
        %v1159 = vadd.f32 %v390, %v849
        %v1160 = vadd.f32 %v391, %v851
        %v1161 = vadd.f32 %v392, %v855
        %v1162 = vadd.f32 %v393, %v857
        %v1163 = vadd.f32 %v394, %v861
        %v1164 = vadd.f32 %v395, %v863
        %v1165 = vadd.f32 %v396, %v867
        %v1166 = vadd.f32 %v397, %v869
        %v1167 = vadd.f32 %v398, %v873
        %v1168 = vadd.f32 %v399, %v875
        %v1169 = vadd.f32 %v400, %v879
        %v1170 = vadd.f32 %v401, %v881
        %v1171 = vadd.f32 %v402, %v885
        %v1172 = vadd.f32 %v403, %v887
        %v1173 = vadd.f32 %v404, %v891
        %v1174 = vadd.f32 %v405, %v893
        %v1175 = vadd.f32 %v406, %v897
        %v1176 = vadd.f32 %v407, %v899
        %v1177 = vadd.f32 %v408, %v903
        %v1178 = vadd.f32 %v409, %v905
        %v1179 = vadd.f32 %v410, %v909
        %v1180 = vadd.f32 %v411, %v911
        %v1181 = vadd.f32 %v412, %v915
        %v1182 = vadd.f32 %v413, %v917
        %v1183 = vadd.f32 %v414, %v921
        %v1184 = vadd.f32 %v415, %v923
        %v1185 = vadd.f32 %v416, %v927
        %v1186 = vadd.f32 %v417, %v929
        %v1187 = vadd.f32 %v418, %v933
        %v1188 = vadd.f32 %v419, %v935
        %v1189 = vadd.f32 %v420, %v939
        %v1190 = vadd.f32 %v421, %v941
        %v1191 = vadd.f32 %v422, %v945
        %v1192 = vadd.f32 %v423, %v947
        %v1193 = vadd.f32 %v424, %v951
        %v1194 = vadd.f32 %v425, %v953
        %v1195 = vadd.f32 %v426, %v957
        %v1196 = vadd.f32 %v427, %v959
        %v1197 = vadd.f32 %v428, %v963
        %v1198 = vadd.f32 %v429, %v965
        %v1199 = vadd.f32 %v430, %v969
        %v1200 = vadd.f32 %v431, %v971
        %v1201 = vadd.f32 %v432, %v975
        %v1202 = vadd.f32 %v433, %v977
        %v1203 = vadd.f32 %v434, %v981
        %v1204 = vadd.f32 %v435, %v983
        %v1205 = vadd.f32 %v436, %v987
        %v1206 = vadd.f32 %v437, %v989
        %v1207 = vadd.f32 %v438, %v993
        %v1208 = vadd.f32 %v439, %v995
        %v1209 = vadd.f32 %v440, %v999
        %v1210 = vadd.f32 %v441, %v1001
        %v1211 = vadd.f32 %v442, %v1005
        %v1212 = vadd.f32 %v443, %v1007
        %v1213 = vadd.f32 %v444, %v1011
        %v1214 = vadd.f32 %v445, %v1013
        %v1215 = vadd.f32 %v446, %v1017
        %v1216 = vadd.f32 %v447, %v1019
        %v1217 = vadd.f32 %v448, %v1023
        %v1218 = vadd.f32 %v449, %v1025
        %v1219 = vadd.f32 %v450, %v1029
        %v1220 = vadd.f32 %v451, %v1031
        %v1221 = vadd.f32 %v452, %v1035
        %v1222 = vadd.f32 %v453, %v1037
        %v1223 = vadd.f32 %v454, %v1041
        %v1224 = vadd.f32 %v455, %v1043
        %v1225 = vadd.f32 %v456, %v1047
        %v1226 = vadd.f32 %v457, %v1049
        %v1227 = vadd.f32 %v458, %v1053
        %v1228 = vadd.f32 %v459, %v1055
        %v1229 = vadd.f32 %v460, %v1059
        %v1230 = vadd.f32 %v461, %v1061
        %v1231 = vadd.f32 %v462, %v1065
        %v1232 = vadd.f32 %v463, %v1067
        %v1233 = vadd.f32 %v464, %v1071
        %v1234 = vadd.f32 %v465, %v1073
        %v1235 = vadd.f32 %v466, %v1077
        %v1236 = vadd.f32 %v467, %v1079
        %v1237 = vadd.f32 %v468, %v1083
        %v1238 = vadd.f32 %v469, %v1085
        %v1239 = vadd.f32 %v470, %v1089
        %v1240 = vadd.f32 %v471, %v1091
        %v1241 = vadd.f32 %v472, %v1095
        %v1242 = vadd.f32 %v473, %v1097
        %v1243 = vadd.f32 %v474, %v1101
        %v1244 = vadd.f32 %v475, %v1103
        %v1245 = vadd.f32 %v476, %v1107
        %v1246 = vadd.f32 %v477, %v1109
        %v1247 = vadd.f32 %v478, %v1113
        %v1248 = vadd.f32 %v479, %v1115
        %v1249 = vadd.f32 %v480, %v1119
        %v1250 = vadd.f32 %v481, %v1121
        %1251 = vst [vmem:[#allocation2] sm:$0xff] %v1123
        %1252 = vst [vmem:[#allocation2 + $0x8] sm:$0xff] %v1124
        %1253 = vst [vmem:[#allocation2 + $0x10] sm:$0xff] %v1125
        %1254 = vst [vmem:[#allocation2 + $0x18] sm:$0xff] %v1126
        %1255 = vst [vmem:[#allocation2 + $0x20] sm:$0xff] %v1127
        %1256 = vst [vmem:[#allocation2 + $0x28] sm:$0xff] %v1128
        %1257 = vst [vmem:[#allocation2 + $0x30] sm:$0xff] %v1129
        %1258 = vst [vmem:[#allocation2 + $0x38] sm:$0xff] %v1130
        %1259 = vst [vmem:[#allocation2 + $0x40] sm:$0xff] %v1131
        %1260 = vst [vmem:[#allocation2 + $0x48] sm:$0xff] %v1132
        %1261 = vst [vmem:[#allocation2 + $0x50] sm:$0xff] %v1133
        %1262 = vst [vmem:[#allocation2 + $0x58] sm:$0xff] %v1134
        %1263 = vst [vmem:[#allocation2 + $0x60] sm:$0xff] %v1135
        %1264 = vst [vmem:[#allocation2 + $0x68] sm:$0xff] %v1136
        %1265 = vst [vmem:[#allocation2 + $0x70] sm:$0xff] %v1137
        %1266 = vst [vmem:[#allocation2 + $0x78] sm:$0xff] %v1138
        %1267 = vst [vmem:[#allocation2 + $0x80] sm:$0xff] %v1139
        %1268 = vst [vmem:[#allocation2 + $0x88] sm:$0xff] %v1140
        %1269 = vst [vmem:[#allocation2 + $0x90] sm:$0xff] %v1141
        %1270 = vst [vmem:[#allocation2 + $0x98] sm:$0xff] %v1142
        %1271 = vst [vmem:[#allocation2 + $0xa0] sm:$0xff] %v1143
        %1272 = vst [vmem:[#allocation2 + $0xa8] sm:$0xff] %v1144
        %1273 = vst [vmem:[#allocation2 + $0xb0] sm:$0xff] %v1145
        %1274 = vst [vmem:[#allocation2 + $0xb8] sm:$0xff] %v1146
        %1275 = vst [vmem:[#allocation2 + $0xc0] sm:$0xff] %v1147
        %1276 = vst [vmem:[#allocation2 + $0xc8] sm:$0xff] %v1148
        %1277 = vst [vmem:[#allocation2 + $0xd0] sm:$0xff] %v1149
        %1278 = vst [vmem:[#allocation2 + $0xd8] sm:$0xff] %v1150
        %1279 = vst [vmem:[#allocation2 + $0xe0] sm:$0xff] %v1151
        %1280 = vst [vmem:[#allocation2 + $0xe8] sm:$0xff] %v1152
        %1281 = vst [vmem:[#allocation2 + $0xf0] sm:$0xff] %v1153
        %1282 = vst [vmem:[#allocation2 + $0xf8] sm:$0xff] %v1154
        %1283 = vst [vmem:[#allocation2 + $0x100] sm:$0xff] %v1155
        %1284 = vst [vmem:[#allocation2 + $0x108] sm:$0xff] %v1156
        %1285 = vst [vmem:[#allocation2 + $0x110] sm:$0xff] %v1157
        %1286 = vst [vmem:[#allocation2 + $0x118] sm:$0xff] %v1158
        %1287 = vst [vmem:[#allocation2 + $0x120] sm:$0xff] %v1159
        %1288 = vst [vmem:[#allocation2 + $0x128] sm:$0xff] %v1160
        %1289 = vst [vmem:[#allocation2 + $0x130] sm:$0xff] %v1161
        %1290 = vst [vmem:[#allocation2 + $0x138] sm:$0xff] %v1162
        %1291 = vst [vmem:[#allocation2 + $0x140] sm:$0xff] %v1163
        %1292 = vst [vmem:[#allocation2 + $0x148] sm:$0xff] %v1164
        %1293 = vst [vmem:[#allocation2 + $0x150] sm:$0xff] %v1165
        %1294 = vst [vmem:[#allocation2 + $0x158] sm:$0xff] %v1166
        %1295 = vst [vmem:[#allocation2 + $0x160] sm:$0xff] %v1167
        %1296 = vst [vmem:[#allocation2 + $0x168] sm:$0xff] %v1168
        %1297 = vst [vmem:[#allocation2 + $0x170] sm:$0xff] %v1169
        %1298 = vst [vmem:[#allocation2 + $0x178] sm:$0xff] %v1170
        %1299 = vst [vmem:[#allocation2 + $0x180] sm:$0xff] %v1171
        %1300 = vst [vmem:[#allocation2 + $0x188] sm:$0xff] %v1172
        %1301 = vst [vmem:[#allocation2 + $0x190] sm:$0xff] %v1173
        %1302 = vst [vmem:[#allocation2 + $0x198] sm:$0xff] %v1174
        %1303 = vst [vmem:[#allocation2 + $0x1a0] sm:$0xff] %v1175
        %1304 = vst [vmem:[#allocation2 + $0x1a8] sm:$0xff] %v1176
        %1305 = vst [vmem:[#allocation2 + $0x1b0] sm:$0xff] %v1177
        %1306 = vst [vmem:[#allocation2 + $0x1b8] sm:$0xff] %v1178
        %1307 = vst [vmem:[#allocation2 + $0x1c0] sm:$0xff] %v1179
        %1308 = vst [vmem:[#allocation2 + $0x1c8] sm:$0xff] %v1180
        %1309 = vst [vmem:[#allocation2 + $0x1d0] sm:$0xff] %v1181
        %1310 = vst [vmem:[#allocation2 + $0x1d8] sm:$0xff] %v1182
        %1311 = vst [vmem:[#allocation2 + $0x1e0] sm:$0xff] %v1183
        %1312 = vst [vmem:[#allocation2 + $0x1e8] sm:$0xff] %v1184
        %1313 = vst [vmem:[#allocation2 + $0x1f0] sm:$0xff] %v1185
        %1314 = vst [vmem:[#allocation2 + $0x1f8] sm:$0xff] %v1186
        %1315 = vst [vmem:[#allocation2 + $0x200] sm:$0xff] %v1187
        %1316 = vst [vmem:[#allocation2 + $0x208] sm:$0xff] %v1188
        %1317 = vst [vmem:[#allocation2 + $0x210] sm:$0xff] %v1189
        %1318 = vst [vmem:[#allocation2 + $0x218] sm:$0xff] %v1190
        %1319 = vst [vmem:[#allocation2 + $0x220] sm:$0xff] %v1191
        %1320 = vst [vmem:[#allocation2 + $0x228] sm:$0xff] %v1192
        %1321 = vst [vmem:[#allocation2 + $0x230] sm:$0xff] %v1193
        %1322 = vst [vmem:[#allocation2 + $0x238] sm:$0xff] %v1194
        %1323 = vst [vmem:[#allocation2 + $0x240] sm:$0xff] %v1195
        %1324 = vst [vmem:[#allocation2 + $0x248] sm:$0xff] %v1196
        %1325 = vst [vmem:[#allocation2 + $0x250] sm:$0xff] %v1197
        %1326 = vst [vmem:[#allocation2 + $0x258] sm:$0xff] %v1198
        %1327 = vst [vmem:[#allocation2 + $0x260] sm:$0xff] %v1199
        %1328 = vst [vmem:[#allocation2 + $0x268] sm:$0xff] %v1200
        %1329 = vst [vmem:[#allocation2 + $0x270] sm:$0xff] %v1201
        %1330 = vst [vmem:[#allocation2 + $0x278] sm:$0xff] %v1202
        %1331 = vst [vmem:[#allocation2 + $0x280] sm:$0xff] %v1203
        %1332 = vst [vmem:[#allocation2 + $0x288] sm:$0xff] %v1204
        %1333 = vst [vmem:[#allocation2 + $0x290] sm:$0xff] %v1205
        %1334 = vst [vmem:[#allocation2 + $0x298] sm:$0xff] %v1206
        %1335 = vst [vmem:[#allocation2 + $0x2a0] sm:$0xff] %v1207
        %1336 = vst [vmem:[#allocation2 + $0x2a8] sm:$0xff] %v1208
        %1337 = vst [vmem:[#allocation2 + $0x2b0] sm:$0xff] %v1209
        %1338 = vst [vmem:[#allocation2 + $0x2b8] sm:$0xff] %v1210
        %1339 = vst [vmem:[#allocation2 + $0x2c0] sm:$0xff] %v1211
        %1340 = vst [vmem:[#allocation2 + $0x2c8] sm:$0xff] %v1212
        %1341 = vst [vmem:[#allocation2 + $0x2d0] sm:$0xff] %v1213
        %1342 = vst [vmem:[#allocation2 + $0x2d8] sm:$0xff] %v1214
        %1343 = vst [vmem:[#allocation2 + $0x2e0] sm:$0xff] %v1215
        %1344 = vst [vmem:[#allocation2 + $0x2e8] sm:$0xff] %v1216
        %1345 = vst [vmem:[#allocation2 + $0x2f0] sm:$0xff] %v1217
        %1346 = vst [vmem:[#allocation2 + $0x2f8] sm:$0xff] %v1218
        %1347 = vst [vmem:[#allocation2 + $0x300] sm:$0xff] %v1219
        %1348 = vst [vmem:[#allocation2 + $0x308] sm:$0xff] %v1220
        %1349 = vst [vmem:[#allocation2 + $0x310] sm:$0xff] %v1221
        %1350 = vst [vmem:[#allocation2 + $0x318] sm:$0xff] %v1222
        %1351 = vst [vmem:[#allocation2 + $0x320] sm:$0xff] %v1223
        %1352 = vst [vmem:[#allocation2 + $0x328] sm:$0xff] %v1224
        %1353 = vst [vmem:[#allocation2 + $0x330] sm:$0xff] %v1225
        %1354 = vst [vmem:[#allocation2 + $0x338] sm:$0xff] %v1226
        %1355 = vst [vmem:[#allocation2 + $0x340] sm:$0xff] %v1227
        %1356 = vst [vmem:[#allocation2 + $0x348] sm:$0xff] %v1228
        %1357 = vst [vmem:[#allocation2 + $0x350] sm:$0xff] %v1229
        %1358 = vst [vmem:[#allocation2 + $0x358] sm:$0xff] %v1230
        %1359 = vst [vmem:[#allocation2 + $0x360] sm:$0xff] %v1231
        %1360 = vst [vmem:[#allocation2 + $0x368] sm:$0xff] %v1232
        %1361 = vst [vmem:[#allocation2 + $0x370] sm:$0xff] %v1233
        %1362 = vst [vmem:[#allocation2 + $0x378] sm:$0xff] %v1234
        %1363 = vst [vmem:[#allocation2 + $0x380] sm:$0xff] %v1235
        %1364 = vst [vmem:[#allocation2 + $0x388] sm:$0xff] %v1236
        %1365 = vst [vmem:[#allocation2 + $0x390] sm:$0xff] %v1237
        %1366 = vst [vmem:[#allocation2 + $0x398] sm:$0xff] %v1238
        %1367 = vst [vmem:[#allocation2 + $0x3a0] sm:$0xff] %v1239
        %1368 = vst [vmem:[#allocation2 + $0x3a8] sm:$0xff] %v1240
        %1369 = vst [vmem:[#allocation2 + $0x3b0] sm:$0xff] %v1241
        %1370 = vst [vmem:[#allocation2 + $0x3b8] sm:$0xff] %v1242
        %1371 = vst [vmem:[#allocation2 + $0x3c0] sm:$0xff] %v1243
        %1372 = vst [vmem:[#allocation2 + $0x3c8] sm:$0xff] %v1244
        %1373 = vst [vmem:[#allocation2 + $0x3d0] sm:$0xff] %v1245
        %1374 = vst [vmem:[#allocation2 + $0x3d8] sm:$0xff] %v1246
        %1375 = vst [vmem:[#allocation2 + $0x3e0] sm:$0xff] %v1247
        %1376 = vst [vmem:[#allocation2 + $0x3e8] sm:$0xff] %v1248
        %1377 = vst [vmem:[#allocation2 + $0x3f0] sm:$0xff] %v1249
        %1378 = vst [vmem:[#allocation2 + $0x3f8] sm:$0xff] %v1250
        // Predicated region
        $region41: #{tpu_custom_call.1} parent=27 // pred_check
          %p1379 = pneg %p222
        $region42: #{tpu_custom_call.1} parent=27 // pred_check_branch
          %1381 = sbr.rel (%p1379) target = $region44
        $region43: #{tpu_custom_call.1} parent=27 // pred_region
          %v1382 = vld [vmem:[#allocation2] sm:$0xff]
          %v1383 = vld [vmem:[#allocation2 + $0x8] sm:$0xff]
          %v1384 = vld [vmem:[#allocation2 + $0x10] sm:$0xff]
          %v1385 = vld [vmem:[#allocation2 + $0x18] sm:$0xff]
          %v1386 = vld [vmem:[#allocation2 + $0x20] sm:$0xff]
          %v1387 = vld [vmem:[#allocation2 + $0x28] sm:$0xff]
          %v1388 = vld [vmem:[#allocation2 + $0x30] sm:$0xff]
          %v1389 = vld [vmem:[#allocation2 + $0x38] sm:$0xff]
          %v1390 = vld [vmem:[#allocation2 + $0x40] sm:$0xff]
          %v1391 = vld [vmem:[#allocation2 + $0x48] sm:$0xff]
          %v1392 = vld [vmem:[#allocation2 + $0x50] sm:$0xff]
          %v1393 = vld [vmem:[#allocation2 + $0x58] sm:$0xff]
          %v1394 = vld [vmem:[#allocation2 + $0x60] sm:$0xff]
          %v1395 = vld [vmem:[#allocation2 + $0x68] sm:$0xff]
          %v1396 = vld [vmem:[#allocation2 + $0x70] sm:$0xff]
          %v1397 = vld [vmem:[#allocation2 + $0x78] sm:$0xff]
          %v1398 = vld [vmem:[#allocation2 + $0x80] sm:$0xff]
          %v1399 = vld [vmem:[#allocation2 + $0x88] sm:$0xff]
          %v1400 = vld [vmem:[#allocation2 + $0x90] sm:$0xff]
          %v1401 = vld [vmem:[#allocation2 + $0x98] sm:$0xff]
          %v1402 = vld [vmem:[#allocation2 + $0xa0] sm:$0xff]
          %v1403 = vld [vmem:[#allocation2 + $0xa8] sm:$0xff]
          %v1404 = vld [vmem:[#allocation2 + $0xb0] sm:$0xff]
          %v1405 = vld [vmem:[#allocation2 + $0xb8] sm:$0xff]
          %v1406 = vld [vmem:[#allocation2 + $0xc0] sm:$0xff]
          %v1407 = vld [vmem:[#allocation2 + $0xc8] sm:$0xff]
          %v1408 = vld [vmem:[#allocation2 + $0xd0] sm:$0xff]
          %v1409 = vld [vmem:[#allocation2 + $0xd8] sm:$0xff]
          %v1410 = vld [vmem:[#allocation2 + $0xe0] sm:$0xff]
          %v1411 = vld [vmem:[#allocation2 + $0xe8] sm:$0xff]
          %v1412 = vld [vmem:[#allocation2 + $0xf0] sm:$0xff]
          %v1413 = vld [vmem:[#allocation2 + $0xf8] sm:$0xff]
          %v1414 = vld [vmem:[#allocation2 + $0x100] sm:$0xff]
          %v1415 = vld [vmem:[#allocation2 + $0x108] sm:$0xff]
          %v1416 = vld [vmem:[#allocation2 + $0x110] sm:$0xff]
          %v1417 = vld [vmem:[#allocation2 + $0x118] sm:$0xff]
          %v1418 = vld [vmem:[#allocation2 + $0x120] sm:$0xff]
          %v1419 = vld [vmem:[#allocation2 + $0x128] sm:$0xff]
          %v1420 = vld [vmem:[#allocation2 + $0x130] sm:$0xff]
          %v1421 = vld [vmem:[#allocation2 + $0x138] sm:$0xff]
          %v1422 = vld [vmem:[#allocation2 + $0x140] sm:$0xff]
          %v1423 = vld [vmem:[#allocation2 + $0x148] sm:$0xff]
          %v1424 = vld [vmem:[#allocation2 + $0x150] sm:$0xff]
          %v1425 = vld [vmem:[#allocation2 + $0x158] sm:$0xff]
          %v1426 = vld [vmem:[#allocation2 + $0x160] sm:$0xff]
          %v1427 = vld [vmem:[#allocation2 + $0x168] sm:$0xff]
          %v1428 = vld [vmem:[#allocation2 + $0x170] sm:$0xff]
          %v1429 = vld [vmem:[#allocation2 + $0x178] sm:$0xff]
          %v1430 = vld [vmem:[#allocation2 + $0x180] sm:$0xff]
          %v1431 = vld [vmem:[#allocation2 + $0x188] sm:$0xff]
          %v1432 = vld [vmem:[#allocation2 + $0x190] sm:$0xff]
          %v1433 = vld [vmem:[#allocation2 + $0x198] sm:$0xff]
          %v1434 = vld [vmem:[#allocation2 + $0x1a0] sm:$0xff]
          %v1435 = vld [vmem:[#allocation2 + $0x1a8] sm:$0xff]
          %v1436 = vld [vmem:[#allocation2 + $0x1b0] sm:$0xff]
          %v1437 = vld [vmem:[#allocation2 + $0x1b8] sm:$0xff]
          %v1438 = vld [vmem:[#allocation2 + $0x1c0] sm:$0xff]
          %v1439 = vld [vmem:[#allocation2 + $0x1c8] sm:$0xff]
          %v1440 = vld [vmem:[#allocation2 + $0x1d0] sm:$0xff]
          %v1441 = vld [vmem:[#allocation2 + $0x1d8] sm:$0xff]
          %v1442 = vld [vmem:[#allocation2 + $0x1e0] sm:$0xff]
          %v1443 = vld [vmem:[#allocation2 + $0x1e8] sm:$0xff]
          %v1444 = vld [vmem:[#allocation2 + $0x1f0] sm:$0xff]
          %v1445 = vld [vmem:[#allocation2 + $0x1f8] sm:$0xff]
          %v1446 = vld [vmem:[#allocation2 + $0x200] sm:$0xff]
          %v1447 = vld [vmem:[#allocation2 + $0x208] sm:$0xff]
          %v1448 = vld [vmem:[#allocation2 + $0x210] sm:$0xff]
          %v1449 = vld [vmem:[#allocation2 + $0x218] sm:$0xff]
          %v1450 = vld [vmem:[#allocation2 + $0x220] sm:$0xff]
          %v1451 = vld [vmem:[#allocation2 + $0x228] sm:$0xff]
          %v1452 = vld [vmem:[#allocation2 + $0x230] sm:$0xff]
          %v1453 = vld [vmem:[#allocation2 + $0x238] sm:$0xff]
          %v1454 = vld [vmem:[#allocation2 + $0x240] sm:$0xff]
          %v1455 = vld [vmem:[#allocation2 + $0x248] sm:$0xff]
          %v1456 = vld [vmem:[#allocation2 + $0x250] sm:$0xff]
          %v1457 = vld [vmem:[#allocation2 + $0x258] sm:$0xff]
          %v1458 = vld [vmem:[#allocation2 + $0x260] sm:$0xff]
          %v1459 = vld [vmem:[#allocation2 + $0x268] sm:$0xff]
          %v1460 = vld [vmem:[#allocation2 + $0x270] sm:$0xff]
          %v1461 = vld [vmem:[#allocation2 + $0x278] sm:$0xff]
          %v1462 = vld [vmem:[#allocation2 + $0x280] sm:$0xff]
          %v1463 = vld [vmem:[#allocation2 + $0x288] sm:$0xff]
          %v1464 = vld [vmem:[#allocation2 + $0x290] sm:$0xff]
          %v1465 = vld [vmem:[#allocation2 + $0x298] sm:$0xff]
          %v1466 = vld [vmem:[#allocation2 + $0x2a0] sm:$0xff]
          %v1467 = vld [vmem:[#allocation2 + $0x2a8] sm:$0xff]
          %v1468 = vld [vmem:[#allocation2 + $0x2b0] sm:$0xff]
          %v1469 = vld [vmem:[#allocation2 + $0x2b8] sm:$0xff]
          %v1470 = vld [vmem:[#allocation2 + $0x2c0] sm:$0xff]
          %v1471 = vld [vmem:[#allocation2 + $0x2c8] sm:$0xff]
          %v1472 = vld [vmem:[#allocation2 + $0x2d0] sm:$0xff]
          %v1473 = vld [vmem:[#allocation2 + $0x2d8] sm:$0xff]
          %v1474 = vld [vmem:[#allocation2 + $0x2e0] sm:$0xff]
          %v1475 = vld [vmem:[#allocation2 + $0x2e8] sm:$0xff]
          %v1476 = vld [vmem:[#allocation2 + $0x2f0] sm:$0xff]
          %v1477 = vld [vmem:[#allocation2 + $0x2f8] sm:$0xff]
          %v1478 = vld [vmem:[#allocation2 + $0x300] sm:$0xff]
          %v1479 = vld [vmem:[#allocation2 + $0x308] sm:$0xff]
          %v1480 = vld [vmem:[#allocation2 + $0x310] sm:$0xff]
          %v1481 = vld [vmem:[#allocation2 + $0x318] sm:$0xff]
          %v1482 = vld [vmem:[#allocation2 + $0x320] sm:$0xff]
          %v1483 = vld [vmem:[#allocation2 + $0x328] sm:$0xff]
          %v1484 = vld [vmem:[#allocation2 + $0x330] sm:$0xff]
          %v1485 = vld [vmem:[#allocation2 + $0x338] sm:$0xff]
          %v1486 = vld [vmem:[#allocation2 + $0x340] sm:$0xff]
          %v1487 = vld [vmem:[#allocation2 + $0x348] sm:$0xff]
          %v1488 = vld [vmem:[#allocation2 + $0x350] sm:$0xff]
          %v1489 = vld [vmem:[#allocation2 + $0x358] sm:$0xff]
          %v1490 = vld [vmem:[#allocation2 + $0x360] sm:$0xff]
          %v1491 = vld [vmem:[#allocation2 + $0x368] sm:$0xff]
          %v1492 = vld [vmem:[#allocation2 + $0x370] sm:$0xff]
          %v1493 = vld [vmem:[#allocation2 + $0x378] sm:$0xff]
          %v1494 = vld [vmem:[#allocation2 + $0x380] sm:$0xff]
          %v1495 = vld [vmem:[#allocation2 + $0x388] sm:$0xff]
          %v1496 = vld [vmem:[#allocation2 + $0x390] sm:$0xff]
          %v1497 = vld [vmem:[#allocation2 + $0x398] sm:$0xff]
          %v1498 = vld [vmem:[#allocation2 + $0x3a0] sm:$0xff]
          %v1499 = vld [vmem:[#allocation2 + $0x3a8] sm:$0xff]
          %v1500 = vld [vmem:[#allocation2 + $0x3b0] sm:$0xff]
          %v1501 = vld [vmem:[#allocation2 + $0x3b8] sm:$0xff]
          %v1502 = vld [vmem:[#allocation2 + $0x3c0] sm:$0xff]
          %v1503 = vld [vmem:[#allocation2 + $0x3c8] sm:$0xff]
          %v1504 = vld [vmem:[#allocation2 + $0x3d0] sm:$0xff]
          %v1505 = vld [vmem:[#allocation2 + $0x3d8] sm:$0xff]
          %v1506 = vld [vmem:[#allocation2 + $0x3e0] sm:$0xff]
          %v1507 = vld [vmem:[#allocation2 + $0x3e8] sm:$0xff]
          %v1508 = vld [vmem:[#allocation2 + $0x3f0] sm:$0xff]
          %v1509 = vld [vmem:[#allocation2 + $0x3f8] sm:$0xff]
          %1510 = vst [vmem:[%s215] sm:$0xff] %v1382
          %1511 = vst [vmem:[%s215 + $0x8] sm:$0xff] %v1383
          %1512 = vst [vmem:[%s215 + $0x10] sm:$0xff] %v1384
          %1513 = vst [vmem:[%s215 + $0x18] sm:$0xff] %v1385
          %1514 = vst [vmem:[%s215 + $0x20] sm:$0xff] %v1386
          %1515 = vst [vmem:[%s215 + $0x28] sm:$0xff] %v1387
          %1516 = vst [vmem:[%s215 + $0x30] sm:$0xff] %v1388
          %1517 = vst [vmem:[%s215 + $0x38] sm:$0xff] %v1389
          %1518 = vst [vmem:[%s215 + $0x40] sm:$0xff] %v1390
          %1519 = vst [vmem:[%s215 + $0x48] sm:$0xff] %v1391
          %1520 = vst [vmem:[%s215 + $0x50] sm:$0xff] %v1392
          %1521 = vst [vmem:[%s215 + $0x58] sm:$0xff] %v1393
          %1522 = vst [vmem:[%s215 + $0x60] sm:$0xff] %v1394
          %1523 = vst [vmem:[%s215 + $0x68] sm:$0xff] %v1395
          %1524 = vst [vmem:[%s215 + $0x70] sm:$0xff] %v1396
          %1525 = vst [vmem:[%s215 + $0x78] sm:$0xff] %v1397
          %1526 = vst [vmem:[%s215 + $0x80] sm:$0xff] %v1398
          %1527 = vst [vmem:[%s215 + $0x88] sm:$0xff] %v1399
          %1528 = vst [vmem:[%s215 + $0x90] sm:$0xff] %v1400
          %1529 = vst [vmem:[%s215 + $0x98] sm:$0xff] %v1401
          %1530 = vst [vmem:[%s215 + $0xa0] sm:$0xff] %v1402
          %1531 = vst [vmem:[%s215 + $0xa8] sm:$0xff] %v1403
          %1532 = vst [vmem:[%s215 + $0xb0] sm:$0xff] %v1404
          %1533 = vst [vmem:[%s215 + $0xb8] sm:$0xff] %v1405
          %1534 = vst [vmem:[%s215 + $0xc0] sm:$0xff] %v1406
          %1535 = vst [vmem:[%s215 + $0xc8] sm:$0xff] %v1407
          %1536 = vst [vmem:[%s215 + $0xd0] sm:$0xff] %v1408
          %1537 = vst [vmem:[%s215 + $0xd8] sm:$0xff] %v1409
          %1538 = vst [vmem:[%s215 + $0xe0] sm:$0xff] %v1410
          %1539 = vst [vmem:[%s215 + $0xe8] sm:$0xff] %v1411
          %1540 = vst [vmem:[%s215 + $0xf0] sm:$0xff] %v1412
          %1541 = vst [vmem:[%s215 + $0xf8] sm:$0xff] %v1413
          %1542 = vst [vmem:[%s215 + $0x100] sm:$0xff] %v1414
          %1543 = vst [vmem:[%s215 + $0x108] sm:$0xff] %v1415
          %1544 = vst [vmem:[%s215 + $0x110] sm:$0xff] %v1416
          %1545 = vst [vmem:[%s215 + $0x118] sm:$0xff] %v1417
          %1546 = vst [vmem:[%s215 + $0x120] sm:$0xff] %v1418
          %1547 = vst [vmem:[%s215 + $0x128] sm:$0xff] %v1419
          %1548 = vst [vmem:[%s215 + $0x130] sm:$0xff] %v1420
          %1549 = vst [vmem:[%s215 + $0x138] sm:$0xff] %v1421
          %1550 = vst [vmem:[%s215 + $0x140] sm:$0xff] %v1422
          %1551 = vst [vmem:[%s215 + $0x148] sm:$0xff] %v1423
          %1552 = vst [vmem:[%s215 + $0x150] sm:$0xff] %v1424
          %1553 = vst [vmem:[%s215 + $0x158] sm:$0xff] %v1425
          %1554 = vst [vmem:[%s215 + $0x160] sm:$0xff] %v1426
          %1555 = vst [vmem:[%s215 + $0x168] sm:$0xff] %v1427
          %1556 = vst [vmem:[%s215 + $0x170] sm:$0xff] %v1428
          %1557 = vst [vmem:[%s215 + $0x178] sm:$0xff] %v1429
          %1558 = vst [vmem:[%s215 + $0x180] sm:$0xff] %v1430
          %1559 = vst [vmem:[%s215 + $0x188] sm:$0xff] %v1431
          %1560 = vst [vmem:[%s215 + $0x190] sm:$0xff] %v1432
          %1561 = vst [vmem:[%s215 + $0x198] sm:$0xff] %v1433
          %1562 = vst [vmem:[%s215 + $0x1a0] sm:$0xff] %v1434
          %1563 = vst [vmem:[%s215 + $0x1a8] sm:$0xff] %v1435
          %1564 = vst [vmem:[%s215 + $0x1b0] sm:$0xff] %v1436
          %1565 = vst [vmem:[%s215 + $0x1b8] sm:$0xff] %v1437
          %1566 = vst [vmem:[%s215 + $0x1c0] sm:$0xff] %v1438
          %1567 = vst [vmem:[%s215 + $0x1c8] sm:$0xff] %v1439
          %1568 = vst [vmem:[%s215 + $0x1d0] sm:$0xff] %v1440
          %1569 = vst [vmem:[%s215 + $0x1d8] sm:$0xff] %v1441
          %1570 = vst [vmem:[%s215 + $0x1e0] sm:$0xff] %v1442
          %1571 = vst [vmem:[%s215 + $0x1e8] sm:$0xff] %v1443
          %1572 = vst [vmem:[%s215 + $0x1f0] sm:$0xff] %v1444
          %1573 = vst [vmem:[%s215 + $0x1f8] sm:$0xff] %v1445
          %1574 = vst [vmem:[%s215 + $0x200] sm:$0xff] %v1446
          %1575 = vst [vmem:[%s215 + $0x208] sm:$0xff] %v1447
          %1576 = vst [vmem:[%s215 + $0x210] sm:$0xff] %v1448
          %1577 = vst [vmem:[%s215 + $0x218] sm:$0xff] %v1449
          %1578 = vst [vmem:[%s215 + $0x220] sm:$0xff] %v1450
          %1579 = vst [vmem:[%s215 + $0x228] sm:$0xff] %v1451
          %1580 = vst [vmem:[%s215 + $0x230] sm:$0xff] %v1452
          %1581 = vst [vmem:[%s215 + $0x238] sm:$0xff] %v1453
          %1582 = vst [vmem:[%s215 + $0x240] sm:$0xff] %v1454
          %1583 = vst [vmem:[%s215 + $0x248] sm:$0xff] %v1455
          %1584 = vst [vmem:[%s215 + $0x250] sm:$0xff] %v1456
          %1585 = vst [vmem:[%s215 + $0x258] sm:$0xff] %v1457
          %1586 = vst [vmem:[%s215 + $0x260] sm:$0xff] %v1458
          %1587 = vst [vmem:[%s215 + $0x268] sm:$0xff] %v1459
          %1588 = vst [vmem:[%s215 + $0x270] sm:$0xff] %v1460
          %1589 = vst [vmem:[%s215 + $0x278] sm:$0xff] %v1461
          %1590 = vst [vmem:[%s215 + $0x280] sm:$0xff] %v1462
          %1591 = vst [vmem:[%s215 + $0x288] sm:$0xff] %v1463
          %1592 = vst [vmem:[%s215 + $0x290] sm:$0xff] %v1464
          %1593 = vst [vmem:[%s215 + $0x298] sm:$0xff] %v1465
          %1594 = vst [vmem:[%s215 + $0x2a0] sm:$0xff] %v1466
          %1595 = vst [vmem:[%s215 + $0x2a8] sm:$0xff] %v1467
          %1596 = vst [vmem:[%s215 + $0x2b0] sm:$0xff] %v1468
          %1597 = vst [vmem:[%s215 + $0x2b8] sm:$0xff] %v1469
          %1598 = vst [vmem:[%s215 + $0x2c0] sm:$0xff] %v1470
          %1599 = vst [vmem:[%s215 + $0x2c8] sm:$0xff] %v1471
          %1600 = vst [vmem:[%s215 + $0x2d0] sm:$0xff] %v1472
          %1601 = vst [vmem:[%s215 + $0x2d8] sm:$0xff] %v1473
          %1602 = vst [vmem:[%s215 + $0x2e0] sm:$0xff] %v1474
          %1603 = vst [vmem:[%s215 + $0x2e8] sm:$0xff] %v1475
          %1604 = vst [vmem:[%s215 + $0x2f0] sm:$0xff] %v1476
          %1605 = vst [vmem:[%s215 + $0x2f8] sm:$0xff] %v1477
          %1606 = vst [vmem:[%s215 + $0x300] sm:$0xff] %v1478
          %1607 = vst [vmem:[%s215 + $0x308] sm:$0xff] %v1479
          %1608 = vst [vmem:[%s215 + $0x310] sm:$0xff] %v1480
          %1609 = vst [vmem:[%s215 + $0x318] sm:$0xff] %v1481
          %1610 = vst [vmem:[%s215 + $0x320] sm:$0xff] %v1482
          %1611 = vst [vmem:[%s215 + $0x328] sm:$0xff] %v1483
          %1612 = vst [vmem:[%s215 + $0x330] sm:$0xff] %v1484
          %1613 = vst [vmem:[%s215 + $0x338] sm:$0xff] %v1485
          %1614 = vst [vmem:[%s215 + $0x340] sm:$0xff] %v1486
          %1615 = vst [vmem:[%s215 + $0x348] sm:$0xff] %v1487
          %1616 = vst [vmem:[%s215 + $0x350] sm:$0xff] %v1488
          %1617 = vst [vmem:[%s215 + $0x358] sm:$0xff] %v1489
          %1618 = vst [vmem:[%s215 + $0x360] sm:$0xff] %v1490
          %1619 = vst [vmem:[%s215 + $0x368] sm:$0xff] %v1491
          %1620 = vst [vmem:[%s215 + $0x370] sm:$0xff] %v1492
          %1621 = vst [vmem:[%s215 + $0x378] sm:$0xff] %v1493
          %1622 = vst [vmem:[%s215 + $0x380] sm:$0xff] %v1494
          %1623 = vst [vmem:[%s215 + $0x388] sm:$0xff] %v1495
          %1624 = vst [vmem:[%s215 + $0x390] sm:$0xff] %v1496
          %1625 = vst [vmem:[%s215 + $0x398] sm:$0xff] %v1497
          %1626 = vst [vmem:[%s215 + $0x3a0] sm:$0xff] %v1498
          %1627 = vst [vmem:[%s215 + $0x3a8] sm:$0xff] %v1499
          %1628 = vst [vmem:[%s215 + $0x3b0] sm:$0xff] %v1500
          %1629 = vst [vmem:[%s215 + $0x3b8] sm:$0xff] %v1501
          %1630 = vst [vmem:[%s215 + $0x3c0] sm:$0xff] %v1502
          %1631 = vst [vmem:[%s215 + $0x3c8] sm:$0xff] %v1503
          %1632 = vst [vmem:[%s215 + $0x3d0] sm:$0xff] %v1504
          %1633 = vst [vmem:[%s215 + $0x3d8] sm:$0xff] %v1505
          %1634 = vst [vmem:[%s215 + $0x3e0] sm:$0xff] %v1506
          %1635 = vst [vmem:[%s215 + $0x3e8] sm:$0xff] %v1507
          %1636 = vst [vmem:[%s215 + $0x3f0] sm:$0xff] %v1508
          %1637 = vst [vmem:[%s215 + $0x3f8] sm:$0xff] %v1509
        $region44: #{tpu_custom_call.1} parent=27 // pred_fallthru
          _
        %s1638 = sand.u32 %s105, 1
        %s1639 = scalar_lea.sflag [#allocation5], %s1638
        %s1640 = sand.u32 %s105, 1
        %s1641 = smul.addr %s1640, 1024
        %s1642 = scalar_lea.vmem [#allocation8], %s1641
        // Predicated region
        $region45: #{tpu_custom_call.1} parent=27 // pred_check
          %p1643 = pneg %p115
        $region46: #{tpu_custom_call.1} parent=27 // pred_check_branch
          %1645 = sbr.rel (%p1643) target = $region48
        $region47: #{tpu_custom_call.1} parent=27 // pred_region
          %s1646 = smul.u32 64, %s25
          %s1647 = smul.u32 2, %s26
          %s1649 = ssub.s32 16384, 16384
          %1650 = vsyncadd %s1639, %s1649
          %s1651 = smul.addr %s1646, 2
          %s1652 = sadd.s32 %s1647, %s1651
          %s1653 = smul.addr %s1652, 128
          %s1654 = scalar_lea.hbm %s2, %s1653
          %s1655 = sshll.u32 %s1642, 4
          %s1656 = int_to_ptr.vmem [resolvable:$true] %s1655
          %1661 = dma.vmem_to_hbm [thread:$0]  %s1656, 16384, %s1654, %s1639, 256, 256, 16
        $region48: #{tpu_custom_call.1} parent=27 // pred_fallthru
          _
      $region28: #{tpu_custom_call.1} parent=5 // pred_fallthru
        _
      %p1662 = scmp.le.s32.totalorder 2, %s15
      // Predicated region
      $region49: #{tpu_custom_call.1} parent=5 // pred_check
        %p1663 = pneg %p1662
      $region50: #{tpu_custom_call.1} parent=5 // pred_check_branch
        %1665 = sbr.rel (%p1663) target = $region52
      $region51: #{tpu_custom_call.1} parent=5 // pred_region
        %s1666 = ssub.s32 %s15, 2
        // Predicated region
        $region53: #{tpu_custom_call.1} parent=51 // pred_check
          %p1667 = pneg %p121
        $region54: #{tpu_custom_call.1} parent=51 // pred_check_branch
          %1669 = sbr.rel (%p1667) target = $region56
        $region55: #{tpu_custom_call.1} parent=51 // pred_region
          %s1670 = sand.u32 %s106, 1
          %s1671 = scalar_lea.sflag [#allocation5], %s1670
          %s1672 = sand.u32 %s106, 1
          %s1673 = smul.addr %s1672, 1024
          %s1674 = scalar_lea.vmem [#allocation8], %s1673
          %1675 = dma.done %s1671, 16384
        $region56: #{tpu_custom_call.1} parent=51 // pred_fallthru
          _
      $region52: #{tpu_custom_call.1} parent=5 // pred_fallthru
        _
    $region6: #{tpu_custom_call.1} parent=1 // loop_footer
      %s19 = sadd.s32 1, %s15
    $region7: #{tpu_custom_call.1} parent=1 // loop_footer_branch
      %14 = sbr.rel target = $region3
    $region8: #{tpu_custom_call.1} parent=1 // loop_exit
      _
    %1676 = vsyncpa [#allocation4], 1
    %s1677 = scalar_lea.sflag [#allocation4], 1
    %1678 = vsyncpa %s1677, 1
    %1679 = vsyncpa [#allocation7], 1
    %1680 = vsyncpa [#allocation5], 1
    %s1681 = scalar_lea.sflag [#allocation5], 1
    %1682 = vsyncpa %s1681, 1

</llo_original>
